<compile_context>
chip_gen: v7x
topology: tpu7x:2x2x1
jax: 0.10.0
libtpu: 0.0.40
codegen_flags: <defaults>
</compile_context>

<pallas_src>
import functools

import jax
import jax.numpy as jnp
from jax import lax
from jax.experimental import pallas as pl
from jax.experimental.pallas import tpu as pltpu


def attention_kernel(xq_ref, xkv_ref, w_ref, b_ref, ctx_ref, attn_ref,
                     k_scr, v_scr, *, d_attn, scale):
    """One (batch, query-tile) grid step.

    xq_ref   : (1, TQ, Din)    bf16   query rows of this tile
    xkv_ref  : (1, S,  Din)    bf16   full sequence of this batch (for K/V)
    w_ref    : (Din, 3*Dattn)  bf16   fused [Wq | Wk | Wv], resident
    b_ref    : (1, 3*Dattn)    f32    fused [bq | bk | bv], resident
    ctx_ref  : (1, TQ, Dattn)  f32    context-vector output tile
    attn_ref : (1, TQ, S)      bf16   attention-weights output tile
    k_scr    : (S, Dattn)      bf16   per-batch K, persists across query tiles
    v_scr    : (S, Dattn)      bf16   per-batch V, persists across query tiles
    """
    qi = pl.program_id(1)

    # K/V projection once per batch (query-tile axis iterates innermost and is
    # "arbitrary", so qi==0 is guaranteed to run before qi>0 for this batch on
    # the same core).  Bias-add + bf16 cast fused per 128-lane slab.
    @pl.when(qi == 0)
    def _():
        xb = xkv_ref[0]                                             # (S, Din)
        k = jnp.dot(xb, w_ref[:, d_attn:2 * d_attn],
                    preferred_element_type=jnp.float32)
        k_scr[...] = (k + b_ref[:, d_attn:2 * d_attn]).astype(jnp.bfloat16)
        v = jnp.dot(xb, w_ref[:, 2 * d_attn:],
                    preferred_element_type=jnp.float32)
        v_scr[...] = (v + b_ref[:, 2 * d_attn:]).astype(jnp.bfloat16)

    # Q projection for this query tile only; fold 1/sqrt(Dattn) into q.
    xq = xq_ref[0]                                                  # (TQ, Din)
    q = jnp.dot(xq, w_ref[:, :d_attn], preferred_element_type=jnp.float32)
    q = ((q + b_ref[:, :d_attn]) * scale).astype(jnp.bfloat16)

    # scores = q @ k^T without an explicit transpose: contract the last dims.
    s = lax.dot_general(q, k_scr[...], (((1,), (1,)), ((), ())),
                        preferred_element_type=jnp.float32)         # (TQ, S)

    # Numerically stable softmax.  Exact normalization so the returned weights
    # sum to 1 (up to bf16 storage rounding).
    s = s - jnp.max(s, axis=-1, keepdims=True)
    e = jnp.exp(s)          # f32 exp; bf16-exp on v6e/v7x would need chip dispatch
    w = e / jnp.sum(e, axis=-1, keepdims=True)

    attn_ref[0] = w.astype(attn_ref.dtype)                          # bf16 store
    ctx = jnp.dot(w.astype(jnp.bfloat16), v_scr[...],
                  preferred_element_type=jnp.float32)                # (TQ, Dattn)
    ctx_ref[0] = ctx.astype(ctx_ref.dtype)


def attention_layer(x, wq, bq, wk, bk, wv, bv, *, tq=None):
    """x: (B, S, Din); wq/wk/wv: (Din, Dattn); bq/bk/bv: (1, Dattn).

    Returns (context_vector f32 (B,S,Dattn), attention_weights bf16 (B,S,S)).
    """
    B, S, Din = x.shape
    Dattn = wq.shape[1]

    # Query-tile size: 256 fills the 256x256 MXU on v6e/v7x; 128 matches v5e.
    if tq is None:
        if S % 256 == 0:
            tq = 256
        elif S % 128 == 0:
            tq = 128
        else:
            tq = S
    assert S % tq == 0, "sequence length must be divisible by the query tile"
    nq = S // tq

    # Fuse the three projections into one matmul operand; bf16 operands for the
    # MXU with f32 accumulation inside the kernel.
    w_qkv = jnp.concatenate([wq, wk, wv], axis=1).astype(jnp.bfloat16)
    b_qkv = jnp.concatenate([bq, bk, bv], axis=1).astype(jnp.float32)
    x_b = x.astype(jnp.bfloat16)

    kernel = functools.partial(
        attention_kernel, d_attn=Dattn, scale=1.0 / (float(Dattn) ** 0.5))

    # Advisory cost estimate (QKV projection + 2 attention matmuls + exp).
    flops = 2 * B * S * Din * 3 * Dattn + 4 * B * S * S * Dattn
    transcendentals = B * S * S
    bytes_accessed = (2 * B * S * Din * 2          # x (passed twice, bf16)
                      + Din * 3 * Dattn * 2        # fused W (bf16)
                      + 3 * Dattn * 4              # fused bias (f32)
                      + B * S * Dattn * 4          # ctx out (f32)
                      + B * S * S * 2)             # attn out (bf16)

    # Per-step VMEM demand (double-buffered blocks + scratch + score temps),
    # with headroom, clamped to stay within every chip's scoped/physical VMEM.
    demand = (2 * (tq * Din * 2) + 2 * (S * Din * 2)
              + 2 * (Din * 3 * Dattn * 2) + 2 * (3 * Dattn * 4)
              + 2 * (tq * Dattn * 4) + 2 * (tq * S * 2)
              + 2 * (S * Dattn * 2) + 3 * (tq * S * 4))
    vmem_limit = int(min(max(4 * demand, 8 * 1024 * 1024), 32 * 1024 * 1024))

    ctx, attn = pl.pallas_call(
        kernel,
        grid=(B, nq),
        in_specs=[
            # Query rows of this tile.
            pl.BlockSpec((1, tq, Din), lambda b, q: (b, q, 0)),
            # Full sequence of this batch (constant over q -> DMA'd once/batch).
            pl.BlockSpec((1, S, Din), lambda b, q: (b, 0, 0)),
            # Fused weights / bias: constant index_map -> resident, no re-DMA.
            pl.BlockSpec((Din, 3 * Dattn), lambda b, q: (0, 0)),
            pl.BlockSpec((1, 3 * Dattn), lambda b, q: (0, 0)),
        ],
        out_specs=(
            pl.BlockSpec((1, tq, Dattn), lambda b, q: (b, q, 0)),
            pl.BlockSpec((1, tq, S), lambda b, q: (b, q, 0)),
        ),
        out_shape=(
            jax.ShapeDtypeStruct((B, S, Dattn), jnp.float32),   # context
            jax.ShapeDtypeStruct((B, S, S), jnp.bfloat16),      # attn weights
        ),
        scratch_shapes=[
            pltpu.VMEM((S, Dattn), jnp.bfloat16),   # K, persists across q tiles
            pltpu.VMEM((S, Dattn), jnp.bfloat16),   # V, persists across q tiles
        ],
        compiler_params=pltpu.CompilerParams(
            # batch axis independent -> megacore-shardable on v7x;
            # query axis carries the K/V scratch -> "arbitrary".
            dimension_semantics=("parallel", "arbitrary"),
            vmem_limit_bytes=vmem_limit,
        ),
        cost_estimate=pl.CostEstimate(
            flops=flops, transcendentals=transcendentals,
            bytes_accessed=bytes_accessed),
    )(x_b, x_b, w_qkv, b_qkv)

    return ctx, attn


def reference(x, wq, bq, wk, bk, wv, bv):
    q = x @ wq + bq
    k = x @ wk + bk
    v = x @ wv + bv
    s = jnp.einsum("bqd,bkd->bqk", q, k) / jnp.sqrt(jnp.float32(k.shape[-1]))
    w = jax.nn.softmax(s, axis=-1)
    return jnp.einsum("bqk,bkd->bqd", w, v), w


if __name__ == "__main__":
    # Small but TPU-friendly shapes.  Dattn and S are multiples of 128 so the
    # weight-column slabs and the output stores are lane-aligned.  tq=128 is
    # forced here so the (B, S//TQ) grid, the @pl.when(q==0) K/V hoist and the
    # persistent scratch path are all exercised (2 query tiles per batch).
    B, S, Din, Dattn = 2, 256, 64, 128

    key = jax.random.PRNGKey(0)
    kx, kwq, kbq, kwk, kbk, kwv, kbv = jax.random.split(key, 7)

    x = jax.random.normal(kx, (B, S, Din), dtype=jnp.float32)

    # nn.Linear(input_size, attention_size): weight (Dattn, Din) stored
    # pre-transposed as (Din, Dattn); bias stored as (1, Dattn).
    scale = 1.0 / jnp.sqrt(jnp.float32(Din))
    wq = jax.random.uniform(kwq, (Din, Dattn), minval=-scale, maxval=scale)
    bq = jax.random.uniform(kbq, (1, Dattn), minval=-scale, maxval=scale)
    wk = jax.random.uniform(kwk, (Din, Dattn), minval=-scale, maxval=scale)
    bk = jax.random.uniform(kbk, (1, Dattn), minval=-scale, maxval=scale)
    wv = jax.random.uniform(kwv, (Din, Dattn), minval=-scale, maxval=scale)
    bv = jax.random.uniform(kbv, (1, Dattn), minval=-scale, maxval=scale)

    ctx, attn = attention_layer(x, wq, bq, wk, bk, wv, bv, tq=128)
    jax.block_until_ready((ctx, attn))

    ctx_ref, attn_ref = reference(x, wq, bq, wk, bk, wv, bv)
    # bf16 matmul operands + bf16 attention-weight storage vs. f32 reference:
    # expected numeric drift, covered by the loosened tolerance.
    assert jnp.allclose(ctx, ctx_ref, atol=2e-2, rtol=2e-2), "context mismatch"
    assert jnp.allclose(attn.astype(jnp.float32), attn_ref,
                        atol=2e-2, rtol=2e-2), "weights mismatch"

    print("KERNEL_OK")
</pallas_src>

<mosaic_0001>
module attributes {stable_mosaic.version = 11 : i64} {
  func.func @attention_kernel(%arg0: i32, %arg1: i32, %arg2: memref<1x128x64xbf16, #tpu.memory_space<vmem>>, %arg3: memref<1x256x64xbf16, #tpu.memory_space<vmem>>, %arg4: memref<64x384xbf16, #tpu.memory_space<vmem>>, %arg5: memref<1x384xf32, #tpu.memory_space<vmem>>, %arg6: memref<1x128x128xf32, #tpu.memory_space<vmem>>, %arg7: memref<1x128x256xbf16, #tpu.memory_space<vmem>>, %arg8: memref<256x128xbf16, #tpu.memory_space<vmem>>, %arg9: memref<256x128xbf16, #tpu.memory_space<vmem>>) attributes {dimension_semantics = [#tpu.dimension_semantics<parallel>, #tpu.dimension_semantics<arbitrary>], iteration_bounds = array<i64: 2, 2>, scalar_prefetch = 0 : i64, scratch_operands = 2 : i64, tpu.core_type = #tpu.core_type<tc>, window_params = [{transform_indices = @transform_0, window_bounds = array<i64: 1, 128, 64>}, {transform_indices = @transform_1, window_bounds = array<i64: 1, 256, 64>}, {pipeline_mode = #tpu.pipeline_mode<synchronous>, transform_indices = @transform_2, window_bounds = array<i64: 64, 384>}, {pipeline_mode = #tpu.pipeline_mode<synchronous>, transform_indices = @transform_3, window_bounds = array<i64: 1, 384>}, {transform_indices = @transform_4, window_bounds = array<i64: 1, 128, 128>}, {transform_indices = @transform_5, window_bounds = array<i64: 1, 128, 256>}]} {
    %c0_i32 = arith.constant 0 : i32
    %0 = arith.cmpi eq, %arg1, %c0_i32 : i32
    %1 = arith.extui %0 : i1 to i32
    %c0_i32_0 = arith.constant 0 : i32
    %2 = arith.cmpi ne, %1, %c0_i32_0 : i32
    scf.if %2 {
      %c0_22 = arith.constant 0 : index
      %c0_23 = arith.constant 0 : index
      %c0_24 = arith.constant 0 : index
      %34 = vector.load %arg3[%c0_22, %c0_23, %c0_24] : memref<1x256x64xbf16, #tpu.memory_space<vmem>>, vector<1x256x64xbf16>
      %35 = vector.shape_cast %34 : vector<1x256x64xbf16> to vector<256x64xbf16>
      %c0_25 = arith.constant 0 : index
      %c128 = arith.constant 128 : index
      %36 = vector.load %arg4[%c0_25, %c128] : memref<64x384xbf16, #tpu.memory_space<vmem>>, vector<64x128xbf16>
      %cst_26 = arith.constant dense<0.000000e+00> : vector<256x128xf32>
      %37 = tpu.matmul %35, %36, %cst_26 {dimension_numbers = #tpu.dot_dimension_numbers<[1], [0], [0], [1], [0, 0, 1, 1], [], []>} : vector<256x64xbf16>, vector<64x128xbf16>, vector<256x128xf32> -> vector<256x128xf32>
      %c0_27 = arith.constant 0 : index
      %c128_28 = arith.constant 128 : index
      %38 = vector.load %arg5[%c0_27, %c128_28] : memref<1x384xf32, #tpu.memory_space<vmem>>, vector<1x128xf32>
      %39 = vector.broadcast %38 : vector<1x128xf32> to vector<256x128xf32>
      %40 = arith.addf %37, %39 : vector<256x128xf32>
      %41 = arith.truncf %40 : vector<256x128xf32> to vector<256x128xbf16>
      %c0_29 = arith.constant 0 : index
      %c0_30 = arith.constant 0 : index
      %42 = vector.load %arg8[%c0_29, %c0_30] : memref<256x128xbf16, #tpu.memory_space<vmem>>, vector<256x128xbf16>
      tpu.vector_store %arg8[%c0_29, %c0_30], %41 {strides = array<i32>} : memref<256x128xbf16, #tpu.memory_space<vmem>>, vector<256x128xbf16>,
      %c0_31 = arith.constant 0 : index
      %c256 = arith.constant 256 : index
      %43 = vector.load %arg4[%c0_31, %c256] : memref<64x384xbf16, #tpu.memory_space<vmem>>, vector<64x128xbf16>
      %cst_32 = arith.constant dense<0.000000e+00> : vector<256x128xf32>
      %44 = tpu.matmul %35, %43, %cst_32 {dimension_numbers = #tpu.dot_dimension_numbers<[1], [0], [0], [1], [0, 0, 1, 1], [], []>} : vector<256x64xbf16>, vector<64x128xbf16>, vector<256x128xf32> -> vector<256x128xf32>
      %c0_33 = arith.constant 0 : index
      %c256_34 = arith.constant 256 : index
      %45 = vector.load %arg5[%c0_33, %c256_34] : memref<1x384xf32, #tpu.memory_space<vmem>>, vector<1x128xf32>
      %46 = vector.broadcast %45 : vector<1x128xf32> to vector<256x128xf32>
      %47 = arith.addf %44, %46 : vector<256x128xf32>
      %48 = arith.truncf %47 : vector<256x128xf32> to vector<256x128xbf16>
      %c0_35 = arith.constant 0 : index
      %c0_36 = arith.constant 0 : index
      %49 = vector.load %arg9[%c0_35, %c0_36] : memref<256x128xbf16, #tpu.memory_space<vmem>>, vector<256x128xbf16>
      tpu.vector_store %arg9[%c0_35, %c0_36], %48 {strides = array<i32>} : memref<256x128xbf16, #tpu.memory_space<vmem>>, vector<256x128xbf16>,
    } else {
    }
    %c0 = arith.constant 0 : index
    %c0_1 = arith.constant 0 : index
    %c0_2 = arith.constant 0 : index
    %3 = vector.load %arg2[%c0, %c0_1, %c0_2] : memref<1x128x64xbf16, #tpu.memory_space<vmem>>, vector<1x128x64xbf16>
    %4 = vector.shape_cast %3 : vector<1x128x64xbf16> to vector<128x64xbf16>
    %c0_3 = arith.constant 0 : index
    %c0_4 = arith.constant 0 : index
    %5 = vector.load %arg4[%c0_3, %c0_4] : memref<64x384xbf16, #tpu.memory_space<vmem>>, vector<64x128xbf16>
    %cst = arith.constant dense<0.000000e+00> : vector<128x128xf32>
    %6 = tpu.matmul %4, %5, %cst {dimension_numbers = #tpu.dot_dimension_numbers<[1], [0], [0], [1], [0, 0, 1, 1], [], []>} : vector<128x64xbf16>, vector<64x128xbf16>, vector<128x128xf32> -> vector<128x128xf32>
    %c0_5 = arith.constant 0 : index
    %c0_6 = arith.constant 0 : index
    %7 = vector.load %arg5[%c0_5, %c0_6] : memref<1x384xf32, #tpu.memory_space<vmem>>, vector<1x128xf32>
    %8 = vector.broadcast %7 : vector<1x128xf32> to vector<128x128xf32>
    %9 = arith.addf %6, %8 : vector<128x128xf32>
    %cst_7 = arith.constant 0.0883883461 : f32
    %10 = vector.broadcast %cst_7 : f32 to vector<128x128xf32>
    %11 = arith.mulf %9, %10 : vector<128x128xf32>
    %12 = arith.truncf %11 : vector<128x128xf32> to vector<128x128xbf16>
    %c0_8 = arith.constant 0 : index
    %c0_9 = arith.constant 0 : index
    %13 = vector.load %arg8[%c0_8, %c0_9] : memref<256x128xbf16, #tpu.memory_space<vmem>>, vector<256x128xbf16>
    %cst_10 = arith.constant dense<0.000000e+00> : vector<128x256xf32>
    %14 = tpu.matmul %12, %13, %cst_10 {dimension_numbers = #tpu.dot_dimension_numbers<[1], [1], [0], [0], [0, 0, 1, 0], [], []>} : vector<128x128xbf16>, vector<256x128xbf16>, vector<128x256xf32> -> vector<128x256xf32>
    %cst_11 = arith.constant dense<0xFF800000> : vector<128xf32>
    %15 = vector.multi_reduction <maximumf>, %14, %cst_11 [1] : vector<128x256xf32> to vector<128xf32>
    %16 = vector.shape_cast %15 : vector<128xf32> to vector<128x1xf32>
    %17 = vector.broadcast %16 : vector<128x1xf32> to vector<128x256xf32>
    %18 = arith.subf %14, %17 : vector<128x256xf32>
    %19 = math.exp %18 : vector<128x256xf32>
    %cst_12 = arith.constant dense<0.000000e+00> : vector<128xf32>
    %20 = vector.multi_reduction <add>, %19, %cst_12 [1] : vector<128x256xf32> to vector<128xf32>
    %21 = vector.shape_cast %20 : vector<128xf32> to vector<128x1xf32>
    %22 = vector.broadcast %21 : vector<128x1xf32> to vector<128x256xf32>
    %23 = arith.divf %19, %22 : vector<128x256xf32>
    %24 = arith.truncf %23 : vector<128x256xf32> to vector<128x256xbf16>
    %c0_13 = arith.constant 0 : index
    %c0_14 = arith.constant 0 : index
    %c0_15 = arith.constant 0 : index
    %25 = vector.load %arg7[%c0_13, %c0_14, %c0_15] : memref<1x128x256xbf16, #tpu.memory_space<vmem>>, vector<1x128x256xbf16>
    %26 = vector.shape_cast %25 : vector<1x128x256xbf16> to vector<128x256xbf16>
    %27 = vector.shape_cast %24 : vector<128x256xbf16> to vector<1x128x256xbf16>
    tpu.vector_store %arg7[%c0_13, %c0_14, %c0_15], %27 {strides = array<i32>} : memref<1x128x256xbf16, #tpu.memory_space<vmem>>, vector<1x128x256xbf16>,
    %28 = arith.truncf %23 : vector<128x256xf32> to vector<128x256xbf16>
    %c0_16 = arith.constant 0 : index
    %c0_17 = arith.constant 0 : index
    %29 = vector.load %arg9[%c0_16, %c0_17] : memref<256x128xbf16, #tpu.memory_space<vmem>>, vector<256x128xbf16>
    %cst_18 = arith.constant dense<0.000000e+00> : vector<128x128xf32>
    %30 = tpu.matmul %28, %29, %cst_18 {dimension_numbers = #tpu.dot_dimension_numbers<[1], [0], [0], [1], [0, 0, 1, 1], [], []>} : vector<128x256xbf16>, vector<256x128xbf16>, vector<128x128xf32> -> vector<128x128xf32>
    %c0_19 = arith.constant 0 : index
    %c0_20 = arith.constant 0 : index
    %c0_21 = arith.constant 0 : index
    %31 = vector.load %arg6[%c0_19, %c0_20, %c0_21] : memref<1x128x128xf32, #tpu.memory_space<vmem>>, vector<1x128x128xf32>
    %32 = vector.shape_cast %31 : vector<1x128x128xf32> to vector<128x128xf32>
    %33 = vector.shape_cast %30 : vector<128x128xf32> to vector<1x128x128xf32>
    tpu.vector_store %arg6[%c0_19, %c0_20, %c0_21], %33 {strides = array<i32>} : memref<1x128x128xf32, #tpu.memory_space<vmem>>, vector<1x128x128xf32>,
    return
  }
  func.func @transform_0(%arg0: i32, %arg1: i32) -> (i32, i32, i32) {
    %c0_i32 = arith.constant 0 : i32
    %c0_i32_0 = arith.constant 0 : i32
    return %arg0, %arg1, %c0_i32 : i32, i32, i32
  }
  func.func @transform_1(%arg0: i32, %arg1: i32) -> (i32, i32, i32) {
    %c0_i32 = arith.constant 0 : i32
    %c0_i32_0 = arith.constant 0 : i32
    %c0_i32_1 = arith.constant 0 : i32
    return %arg0, %c0_i32, %c0_i32_0 : i32, i32, i32
  }
  func.func @transform_2(%arg0: i32, %arg1: i32) -> (i32, i32) {
    %c0_i32 = arith.constant 0 : i32
    %c0_i32_0 = arith.constant 0 : i32
    %c0_i32_1 = arith.constant 0 : i32
    return %c0_i32, %c0_i32_0 : i32, i32
  }
  func.func @transform_3(%arg0: i32, %arg1: i32) -> (i32, i32) {
    %c0_i32 = arith.constant 0 : i32
    %c0_i32_0 = arith.constant 0 : i32
    %c0_i32_1 = arith.constant 0 : i32
    return %c0_i32, %c0_i32_0 : i32, i32
  }
  func.func @transform_4(%arg0: i32, %arg1: i32) -> (i32, i32, i32) {
    %c0_i32 = arith.constant 0 : i32
    %c0_i32_0 = arith.constant 0 : i32
    return %arg0, %arg1, %c0_i32 : i32, i32, i32
  }
  func.func @transform_5(%arg0: i32, %arg1: i32) -> (i32, i32, i32) {
    %c0_i32 = arith.constant 0 : i32
    %c0_i32_0 = arith.constant 0 : i32
    return %arg0, %arg1, %c0_i32 : i32, i32, i32
  }
}

</mosaic_0001>

<llo_original>
// kernel: tpu_custom_call.1
$region0: #{tpu_custom_call.1}
  #allocation0 [shape = 'u32[]', space=smem, size = 0x4, offset = 0x4, fixed_abs, tag = 'smem constant byte address 0x4 - core index']
  #allocation1 [shape = 'u32[144,128]{1,0:T(1,128)}', space=vmem, size = 0x12000, scoped, tag = 'internal scratch']
  #allocation2 [shape = 'bf16[256,128]{1,0:T(16,128)(2,1)}', space=vmem, size = 0x10000, scoped, tag = 'scratch operand']
  #allocation3 [shape = 'bf16[256,128]{1,0:T(16,128)(2,1)}', space=vmem, size = 0x10000, scoped, tag = 'scratch operand']
  %s0 = inlined_call_operand.vmem [shape: bf16[2,256,64], index: 0, kind: input, shape index: {}]
  %s1 = inlined_call_operand.vmem [shape: bf16[2,256,64], index: 1, kind: input, shape index: {}]
  %s2 = inlined_call_operand.vmem [shape: bf16[64,384], index: 2, kind: input, shape index: {}]
  %s3 = inlined_call_operand.vmem [shape: f32[1,384], index: 3, kind: input, shape index: {}]
  %s4 = inlined_call_operand.hbm [shape: f32[2,256,128], index: 4, kind: output, shape index: {0}]
  %s5 = inlined_call_operand.hbm [shape: bf16[2,256,256], index: 5, kind: output, shape index: {1}]
  %6 = xla_tuple %s4, %s5
  %s7 = sld [smem:[#allocation0]]
  $region61: #{tpu_custom_call.1} parent=0
    _
  %s9 = ssub.s32 1, %s7
  %s10 = scalar_select 0, %s9, %s7
  $region1: #{tpu_custom_call.1} parent=0
    #allocation4 [shape = 'u8[131072]{0}', space=vmem, size = 0x20000, scoped, tag = 'output window, operand 0']
    #allocation5 [shape = 's32[2]{0}', space=sflag, size = 0x8, scoped, tag = 'scoped memory for tpu_custom_call.1']
    #allocation6 [shape = 'u8[131072]{0}', space=vmem, size = 0x20000, scoped, tag = 'output window, operand 1']
    #allocation7 [shape = 's32[2]{0}', space=sflag, size = 0x8, scoped, tag = 'scoped memory for tpu_custom_call.1']
    %11 = vsyncpa [#allocation5], 0
    %s12 = scalar_lea.sflag [#allocation5], 1
    %13 = vsyncpa %s12, 0
    %14 = vsyncpa [#allocation7], 0
    %s15 = scalar_lea.sflag [#allocation7], 1
    %16 = vsyncpa %s15, 0
    loop: start=0, step=1, limit=6
    $region2: #{tpu_custom_call.1} parent=1 // loop_pre_header
      _
    $region3: #{tpu_custom_call.1} parent=1 // loop_header
      %s18 = sphi 0, %s22
      %p19 = scmp.ge.s32.totalorder %s18, 6
      %s25 = sphi 0, %s37
      %s26 = sphi 0, %s33
      %s27 = sphi 0, %s25
      %s28 = sphi 0, %s26
      %s29 = sphi 0, %s27
      %s30 = sphi 0, %s28
      %s42 = sphi 0, %s44
      %s45 = sphi 0, %s42
      %s46 = sphi 0, %s45
      %s62 = sphi 0, %s46
      %s68 = sphi 0, %s70
      %s71 = sphi 0, %s68
      %s72 = sphi 0, %s71
      %s88 = sphi 0, %s72
      %s92 = sphi 0, %s92
      %s94 = sphi 0, %s92
      %s95 = sphi 0, %s94
      %s109 = sphi 0, %s95
      %s113 = sphi 0, %s113
      %s115 = sphi 0, %s113
      %s116 = sphi 0, %s115
      %s130 = sphi 0, %s116
      %s138 = sphi 0, %s140
      %s141 = sphi 0, %s138
      %s142 = sphi 0, %s141
      %s158 = sphi 0, %s142
      %s166 = sphi 0, %s168
      %s169 = sphi 0, %s166
      %s170 = sphi 0, %s169
      %s186 = sphi 0, %s170
    $region4: #{tpu_custom_call.1} parent=1 // loop_header_branch
      %21 = sbr.rel (%p19) target = $region8
    $region5: #{tpu_custom_call.1} parent=1 // loop_body
      %s23 = ssub.s32 %s18, 1
      %s24 = ssub.s32 %s18, 2
      %s31 = sadd.s32 1, %s26
      %p32 = scmp.ge.s32.totalorder %s31, 2
      %s33 = scalar_select %p32, 0, %s31
      %s34 = sadd.s32 1, %s25
      %s35 = scalar_select %p32, %s34, %s25
      %p36 = scmp.ge.s32.totalorder %s35, 2
      %s37 = scalar_select %p36, 0, %s35
      %s38 = ssub.s32 %s25, %s37
      %s39 = ssub.s32 %s26, %s33
      %s40 = sor.u32 %s38, %s39
      %p41 = scmp.eq.s32.totalorder %s40, 0
      %s43 = sadd.s32 %s42, 1
      %s44 = scalar_select %p41, %s42, %s43
      %p47 = pneg %p41
      %p48 = scmp.eq.s32.totalorder %s18, 3
      %p49 = por %p47, %p48
      %p50 = scmp.ne.s32.totalorder %s42, %s45
      %p51 = scmp.eq.s32.totalorder %s18, 0
      %p52 = por %p50, %p51
      %p53 = scmp.ne.s32.totalorder %s42, %s45
      %p54 = scmp.eq.s32.totalorder %s23, 3
      %p55 = por %p53, %p54
      %p56 = scmp.ne.s32.totalorder %s45, %s46
      %p57 = scmp.eq.s32.totalorder %s23, 0
      %p58 = por %p56, %p57
      %p59 = scmp.ne.s32.totalorder %s45, %s46
      %p60 = scmp.eq.s32.totalorder %s24, 3
      %p61 = por %p59, %p60
      %p63 = scmp.ne.s32.totalorder %s46, %s62
      %p64 = scmp.eq.s32.totalorder %s24, 0
      %p65 = por %p63, %p64
      %s66 = ssub.s32 %s25, %s37
      %p67 = scmp.eq.s32.totalorder %s66, 0
      %s69 = sadd.s32 %s68, 1
      %s70 = scalar_select %p67, %s68, %s69
      %p73 = pneg %p67
      %p74 = scmp.eq.s32.totalorder %s18, 3
      %p75 = por %p73, %p74
      %p76 = scmp.ne.s32.totalorder %s68, %s71
      %p77 = scmp.eq.s32.totalorder %s18, 0
      %p78 = por %p76, %p77
      %p79 = scmp.ne.s32.totalorder %s68, %s71
      %p80 = scmp.eq.s32.totalorder %s23, 3
      %p81 = por %p79, %p80
      %p82 = scmp.ne.s32.totalorder %s71, %s72
      %p83 = scmp.eq.s32.totalorder %s23, 0
      %p84 = por %p82, %p83
      %p85 = scmp.ne.s32.totalorder %s71, %s72
      %p86 = scmp.eq.s32.totalorder %s24, 3
      %p87 = por %p85, %p86
      %p89 = scmp.ne.s32.totalorder %s72, %s88
      %p90 = scmp.eq.s32.totalorder %s24, 0
      %p91 = por %p89, %p90
      %s93 = sadd.s32 %s92, 1
      %p96 = scmp.eq.s32.totalorder %s18, 3
      %p97 = scmp.ne.s32.totalorder %s92, %s94
      %p98 = scmp.eq.s32.totalorder %s18, 0
      %p99 = por %p97, %p98
      %p100 = scmp.ne.s32.totalorder %s92, %s94
      %p101 = scmp.eq.s32.totalorder %s23, 3
      %p102 = por %p100, %p101
      %p103 = scmp.ne.s32.totalorder %s94, %s95
      %p104 = scmp.eq.s32.totalorder %s23, 0
      %p105 = por %p103, %p104
      %p106 = scmp.ne.s32.totalorder %s94, %s95
      %p107 = scmp.eq.s32.totalorder %s24, 3
      %p108 = por %p106, %p107
      %p110 = scmp.ne.s32.totalorder %s95, %s109
      %p111 = scmp.eq.s32.totalorder %s24, 0
      %p112 = por %p110, %p111
      %s114 = sadd.s32 %s113, 1
      %p117 = scmp.eq.s32.totalorder %s18, 3
      %p118 = scmp.ne.s32.totalorder %s113, %s115
      %p119 = scmp.eq.s32.totalorder %s18, 0
      %p120 = por %p118, %p119
      %p121 = scmp.ne.s32.totalorder %s113, %s115
      %p122 = scmp.eq.s32.totalorder %s23, 3
      %p123 = por %p121, %p122
      %p124 = scmp.ne.s32.totalorder %s115, %s116
      %p125 = scmp.eq.s32.totalorder %s23, 0
      %p126 = por %p124, %p125
      %p127 = scmp.ne.s32.totalorder %s115, %s116
      %p128 = scmp.eq.s32.totalorder %s24, 3
      %p129 = por %p127, %p128
      %p131 = scmp.ne.s32.totalorder %s116, %s130
      %p132 = scmp.eq.s32.totalorder %s24, 0
      %p133 = por %p131, %p132
      %s134 = ssub.s32 %s25, %s37
      %s135 = ssub.s32 %s26, %s33
      %s136 = sor.u32 %s134, %s135
      %p137 = scmp.eq.s32.totalorder %s136, 0
      %s139 = sadd.s32 %s138, 1
      %s140 = scalar_select %p137, %s138, %s139
      %p143 = pneg %p137
      %p144 = scmp.eq.s32.totalorder %s18, 3
      %p145 = por %p143, %p144
      %p146 = scmp.ne.s32.totalorder %s138, %s141
      %p147 = scmp.eq.s32.totalorder %s18, 0
      %p148 = por %p146, %p147
      %p149 = scmp.ne.s32.totalorder %s138, %s141
      %p150 = scmp.eq.s32.totalorder %s23, 3
      %p151 = por %p149, %p150
      %p152 = scmp.ne.s32.totalorder %s141, %s142
      %p153 = scmp.eq.s32.totalorder %s23, 0
      %p154 = por %p152, %p153
      %p155 = scmp.ne.s32.totalorder %s141, %s142
      %p156 = scmp.eq.s32.totalorder %s24, 3
      %p157 = por %p155, %p156
      %p159 = scmp.ne.s32.totalorder %s142, %s158
      %p160 = scmp.eq.s32.totalorder %s24, 0
      %p161 = por %p159, %p160
      %s162 = ssub.s32 %s25, %s37
      %s163 = ssub.s32 %s26, %s33
      %s164 = sor.u32 %s162, %s163
      %p165 = scmp.eq.s32.totalorder %s164, 0
      %s167 = sadd.s32 %s166, 1
      %s168 = scalar_select %p165, %s166, %s167
      %p171 = pneg %p165
      %p172 = scmp.eq.s32.totalorder %s18, 3
      %p173 = por %p171, %p172
      %p174 = scmp.ne.s32.totalorder %s166, %s169
      %p175 = scmp.eq.s32.totalorder %s18, 0
      %p176 = por %p174, %p175
      %p177 = scmp.ne.s32.totalorder %s166, %s169
      %p178 = scmp.eq.s32.totalorder %s23, 3
      %p179 = por %p177, %p178
      %p180 = scmp.ne.s32.totalorder %s169, %s170
      %p181 = scmp.eq.s32.totalorder %s23, 0
      %p182 = por %p180, %p181
      %p183 = scmp.ne.s32.totalorder %s169, %s170
      %p184 = scmp.eq.s32.totalorder %s24, 3
      %p185 = por %p183, %p184
      %p187 = scmp.ne.s32.totalorder %s170, %s186
      %p188 = scmp.eq.s32.totalorder %s24, 0
      %p189 = por %p187, %p188
      %p190 = scmp.le.s32.totalorder 1, %s18
      %p191 = scmp.lt.s32.totalorder %s18, 5
      %p192 = pnand %p190, %p191
      %p193 = pneg %p192
      // Predicated region
      $region9: #{tpu_custom_call.1} parent=5 // pred_check
        _
      $region10: #{tpu_custom_call.1} parent=5 // pred_check_branch
        %195 = sbr.rel (%p192) target = $region12
      $region11: #{tpu_custom_call.1} parent=5 // pred_region
        %s196 = ssub.s32 %s18, 1
        // Predicated region
        $region13: #{tpu_custom_call.1} parent=11 // pred_check
          %p197 = pneg %p105
        $region14: #{tpu_custom_call.1} parent=11 // pred_check_branch
          %199 = sbr.rel (%p197) target = $region16
        $region15: #{tpu_custom_call.1} parent=11 // pred_region
          _
        $region16: #{tpu_custom_call.1} parent=11 // pred_fallthru
          _
        // Predicated region
        $region17: #{tpu_custom_call.1} parent=11 // pred_check
          %p200 = pneg %p126
        $region18: #{tpu_custom_call.1} parent=11 // pred_check_branch
          %202 = sbr.rel (%p200) target = $region20
        $region19: #{tpu_custom_call.1} parent=11 // pred_region
          _
        $region20: #{tpu_custom_call.1} parent=11 // pred_fallthru
          _
      $region12: #{tpu_custom_call.1} parent=5 // pred_fallthru
        _
      %p203 = scmp.lt.s32.totalorder %s18, 4
      // Predicated region
      $region21: #{tpu_custom_call.1} parent=5 // pred_check
        %p204 = pneg %p203
      $region22: #{tpu_custom_call.1} parent=5 // pred_check_branch
        %206 = sbr.rel (%p204) target = $region24
      $region23: #{tpu_custom_call.1} parent=5 // pred_region
        // Predicated region
        $region25: #{tpu_custom_call.1} parent=23 // pred_check
          %p207 = pneg %p52
        $region26: #{tpu_custom_call.1} parent=23 // pred_check_branch
          %209 = sbr.rel (%p207) target = $region28
        $region27: #{tpu_custom_call.1} parent=23 // pred_region
          %s210 = smul.u32 16, %s26
          %p211 = scmp.lt.s32.totalorder %s25, 1
          %s212 = scalar_select %p211, %s25, 1
          %p213 = scmp.lt.s32.totalorder %s210, 31
          %s214 = scalar_select %p213, %s210, 31
          %s215 = smul.addr %s212, 32
          %s216 = sadd.s32 %s214, %s215
          %s217 = smul.addr %s216, 4
          %s218 = scalar_lea.vmem %s0, %s217
          %s219 = smul.u32 16, %s26
        $region28: #{tpu_custom_call.1} parent=23 // pred_fallthru
          _
        // Predicated region
        $region29: #{tpu_custom_call.1} parent=23 // pred_check
          %p220 = pneg %p78
        $region30: #{tpu_custom_call.1} parent=23 // pred_check_branch
          %222 = sbr.rel (%p220) target = $region32
        $region31: #{tpu_custom_call.1} parent=23 // pred_region
          %p223 = scmp.lt.s32.totalorder %s25, 1
          %s224 = scalar_select %p223, %s25, 1
          %s225 = smul.addr %s224, 32
          %s226 = smul.addr %s225, 4
          %s227 = scalar_lea.vmem %s1, %s226
        $region32: #{tpu_custom_call.1} parent=23 // pred_fallthru
          _
      $region24: #{tpu_custom_call.1} parent=5 // pred_fallthru
        _
      %p228 = scmp.le.s32.totalorder 1, %s18
      %p229 = scmp.lt.s32.totalorder %s18, 5
      %p230 = pnand %p228, %p229
      %p231 = pneg %p230
      // Predicated region
      $region33: #{tpu_custom_call.1} parent=5 // pred_check
        _
      $region34: #{tpu_custom_call.1} parent=5 // pred_check_branch
        %233 = sbr.rel (%p230) target = $region36
      $region35: #{tpu_custom_call.1} parent=5 // pred_region
        %s234 = ssub.s32 %s18, 1
        %s235 = smul.u32 16, %s28
        %p236 = scmp.lt.s32.totalorder %s27, 1
        %s237 = scalar_select %p236, %s27, 1
        %p238 = scmp.lt.s32.totalorder %s235, 31
        %s239 = scalar_select %p238, %s235, 31
        %s240 = smul.addr %s237, 32
        %s241 = sadd.s32 %s239, %s240
        %s242 = smul.addr %s241, 4
        %s243 = scalar_lea.vmem %s0, %s242
        %p244 = pneg %p58
        %p245 = pneg %p55
        %p246 = scmp.lt.s32.totalorder %s27, 1
        %s247 = scalar_select %p246, %s27, 1
        %s248 = smul.addr %s247, 32
        %s249 = smul.addr %s248, 4
        %s250 = scalar_lea.vmem %s1, %s249
        %p251 = pneg %p84
        %p252 = pneg %p81
        %p253 = pneg %p105
        %p254 = pneg %p102
        %p255 = pneg %p126
        %p256 = pneg %p123
        %p257 = pneg %p154
        %p258 = pneg %p151
        %s259 = sand.u32 %s141, 1
        %s260 = scalar_lea.sflag [#allocation5], %s259
        %s261 = sand.u32 %s141, 1
        %s262 = smul.addr %s261, 128
        %s263 = scalar_lea.vmem [#allocation4], %s262
        %p264 = pneg %p182
        %p265 = pneg %p179
        %s266 = sand.u32 %s169, 1
        %s267 = scalar_lea.sflag [#allocation7], %s266
        %s268 = sand.u32 %s169, 1
        %s269 = smul.addr %s268, 128
        %s270 = scalar_lea.vmem [#allocation6], %s269
        %s271 = smul.u32 16, %s28
        %p272 = scmp.lt.s32.totalorder %s27, 1
        %s273 = scalar_select %p272, %s27, 1
        %p274 = scmp.lt.s32.totalorder %s271, 31
        %s275 = scalar_select %p274, %s271, 31
        %s276 = smul.addr %s273, 32
        %s277 = sadd.s32 %s275, %s276
        %s278 = smul.addr %s277, 4
        %s279 = scalar_lea.vmem %s0, %s278
        %s280 = smul.u32 16, %s28
        %p281 = scmp.lt.s32.totalorder %s27, 1
        %s282 = scalar_select %p281, %s27, 1
        %s283 = smul.addr %s282, 32
        %s284 = smul.addr %s283, 4
        %s285 = scalar_lea.vmem %s1, %s284
        %s286 = smul.u32 16, %s28
        %s287 = smul.u32 16, %s28
        %p289 = scmp.eq.s32.totalorder %s28, 0
        // Predicated region
        $region37: #{tpu_custom_call.1} parent=35 // pred_check
          %p290 = pneg %p289
        $region38: #{tpu_custom_call.1} parent=35 // pred_check_branch
          %292 = sbr.rel (%p290) target = $region40
        $region39: #{tpu_custom_call.1} parent=35 // pred_region
          %v293 = vld [vmem:[%s285] sm:$0xf]
          %v294 = vld [vmem:[%s285 + $0x4] sm:$0xf]
          %v295 = vld [vmem:[%s285 + $0x8] sm:$0xf]
          %v296 = vld [vmem:[%s285 + $0xc] sm:$0xf]
          %v297 = vld [vmem:[%s285 + $0x10] sm:$0xf]
          %v298 = vld [vmem:[%s285 + $0x14] sm:$0xf]
          %v299 = vld [vmem:[%s285 + $0x18] sm:$0xf]
          %v300 = vld [vmem:[%s285 + $0x1c] sm:$0xf]
          %v301 = vld [vmem:[%s285 + $0x20] sm:$0xf]
          %v302 = vld [vmem:[%s285 + $0x24] sm:$0xf]
          %v303 = vld [vmem:[%s285 + $0x28] sm:$0xf]
          %v304 = vld [vmem:[%s285 + $0x2c] sm:$0xf]
          %v305 = vld [vmem:[%s285 + $0x30] sm:$0xf]
          %v306 = vld [vmem:[%s285 + $0x34] sm:$0xf]
          %v307 = vld [vmem:[%s285 + $0x38] sm:$0xf]
          %v308 = vld [vmem:[%s285 + $0x3c] sm:$0xf]
          %v309 = vld [vmem:[%s285 + $0x40] sm:$0xf]
          %v310 = vld [vmem:[%s285 + $0x44] sm:$0xf]
          %v311 = vld [vmem:[%s285 + $0x48] sm:$0xf]
          %v312 = vld [vmem:[%s285 + $0x4c] sm:$0xf]
          %v313 = vld [vmem:[%s285 + $0x50] sm:$0xf]
          %v314 = vld [vmem:[%s285 + $0x54] sm:$0xf]
          %v315 = vld [vmem:[%s285 + $0x58] sm:$0xf]
          %v316 = vld [vmem:[%s285 + $0x5c] sm:$0xf]
          %v317 = vld [vmem:[%s285 + $0x60] sm:$0xf]
          %v318 = vld [vmem:[%s285 + $0x64] sm:$0xf]
          %v319 = vld [vmem:[%s285 + $0x68] sm:$0xf]
          %v320 = vld [vmem:[%s285 + $0x6c] sm:$0xf]
          %v321 = vld [vmem:[%s285 + $0x70] sm:$0xf]
          %v322 = vld [vmem:[%s285 + $0x74] sm:$0xf]
          %v323 = vld [vmem:[%s285 + $0x78] sm:$0xf]
          %v324 = vld [vmem:[%s285 + $0x7c] sm:$0xf]
          %v325 = vld [vmem:[%s2 + $0x4] sm:$0xf]
          %v326 = vld [vmem:[%s2 + $0x10] sm:$0xf]
          %v327 = vld [vmem:[%s2 + $0x1c] sm:$0xf]
          %v328 = vld [vmem:[%s2 + $0x28] sm:$0xf]
          %v329 = vld [vmem:[%s2 + $0x34] sm:$0xf]
          %v330 = vld [vmem:[%s2 + $0x40] sm:$0xf]
          %v331 = vld [vmem:[%s2 + $0x4c] sm:$0xf]
          %v332 = vld [vmem:[%s2 + $0x58] sm:$0xf]
          %v333 = vld [vmem:[%s3 + $0x1] sm:$0x1]
          %v335 = vlaneseq
          %v336 = vshrl.u32 %v335, 7
          %v337 = vsub.s32 0, %v336
          %v338 = vrot.slane %v333, %v337
          %v372 = vunpack.c.l.b16 %v293
          %v373 = vunpack.c.l.b16 %v294
          %v374 = vunpack.c.l.b16 %v295
          %v375 = vunpack.c.l.b16 %v296
          %v376 = vunpack.c.l.b16 %v297
          %v377 = vunpack.c.l.b16 %v298
          %v378 = vunpack.c.l.b16 %v299
          %v379 = vunpack.c.l.b16 %v300
          %v380 = vunpack.c.l.b16 %v301
          %v381 = vunpack.c.l.b16 %v302
          %v382 = vunpack.c.l.b16 %v303
          %v383 = vunpack.c.l.b16 %v304
          %v384 = vunpack.c.l.b16 %v305
          %v385 = vunpack.c.l.b16 %v306
          %v386 = vunpack.c.l.b16 %v307
          %v387 = vunpack.c.l.b16 %v308
          %v388 = vunpack.c.l.b16 %v309
          %v389 = vunpack.c.l.b16 %v310
          %v390 = vunpack.c.l.b16 %v311
          %v391 = vunpack.c.l.b16 %v312
          %v392 = vunpack.c.l.b16 %v313
          %v393 = vunpack.c.l.b16 %v314
          %v394 = vunpack.c.l.b16 %v315
          %v395 = vunpack.c.l.b16 %v316
          %v396 = vunpack.c.l.b16 %v317
          %v397 = vunpack.c.l.b16 %v318
          %v398 = vunpack.c.l.b16 %v319
          %v399 = vunpack.c.l.b16 %v320
          %v400 = vunpack.c.l.b16 %v321
          %v401 = vunpack.c.l.b16 %v322
          %v402 = vunpack.c.l.b16 %v323
          %v403 = vunpack.c.l.b16 %v324
          %v404 = vpack.c.b16 %v373, %v372
          %v405 = vpack.c.b16 %v375, %v374
          %v406 = vpack.c.b16 %v377, %v376
          %v407 = vpack.c.b16 %v379, %v378
          %v408 = vpack.c.b16 %v381, %v380
          %v409 = vpack.c.b16 %v383, %v382
          %v410 = vpack.c.b16 %v385, %v384
          %v411 = vpack.c.b16 %v387, %v386
          %v412 = vpack.c.b16 %v389, %v388
          %v413 = vpack.c.b16 %v391, %v390
          %v414 = vpack.c.b16 %v393, %v392
          %v415 = vpack.c.b16 %v395, %v394
          %v416 = vpack.c.b16 %v397, %v396
          %v417 = vpack.c.b16 %v399, %v398
          %v418 = vpack.c.b16 %v401, %v400
          %v419 = vpack.c.b16 %v403, %v402
          %v428 = vunpack.c.l.b16 %v325
          %v429 = vunpack.c.l.b16 %v326
          %v430 = vunpack.c.l.b16 %v327
          %v431 = vunpack.c.l.b16 %v328
          %v432 = vunpack.c.l.b16 %v329
          %v433 = vunpack.c.l.b16 %v330
          %v434 = vunpack.c.l.b16 %v331
          %v435 = vunpack.c.l.b16 %v332
          %v436 = vpack.c.b16 %v429, %v428
          %v437 = vpack.c.b16 %v431, %v430
          %v438 = vpack.c.b16 %v433, %v432
          %v439 = vpack.c.b16 %v435, %v434
          %vm444 = vcmask 523264
          %v446 = vsel %vm444, %v404, 0
          %v449 = vsel %vm444, %v405, 0
          %v452 = vsel %vm444, %v406, 0
          %v455 = vsel %vm444, %v407, 0
          %v458 = vsel %vm444, %v408, 0
          %v461 = vsel %vm444, %v409, 0
          %v464 = vsel %vm444, %v410, 0
          %v467 = vsel %vm444, %v411, 0
          %v470 = vsel %vm444, %v412, 0
          %v473 = vsel %vm444, %v413, 0
          %v476 = vsel %vm444, %v414, 0
          %v479 = vsel %vm444, %v415, 0
          %v482 = vsel %vm444, %v416, 0
          %v485 = vsel %vm444, %v417, 0
          %v488 = vsel %vm444, %v418, 0
          %v491 = vsel %vm444, %v419, 0
          %493 = vmatprep.subr.bf16.mxu0 0
          %494 = vmatpush1.bf16.msra.mxu0 %v436
          %495 = vmatprep.subr.bf16.mxu0 0
          %496 = vmatpush1.bf16.msra.mxu0 %v437
          %497 = vmatprep.subr.bf16.mxu0 0
          %498 = vmatpush1.bf16.msra.mxu0 %v438
          %499 = vmatprep.subr.bf16.mxu0 0
          %500 = vmatpush1.bf16.msra.mxu0 %v439
          %501 = vmatprep.subr.bf16.mxu0 0
          %502 = vmatpush1.bf16.msra.mxu0 0
          %503 = vmatprep.subr.bf16.mxu0 0
          %504 = vmatpush1.bf16.msra.mxu0 0
          %505 = vmatprep.subr.bf16.mxu0 0
          %506 = vmatpush1.bf16.msra.mxu0 0
          %507 = vmatprep.subr.bf16.mxu0 0
          %508 = vmatpush1.bf16.msra.mxu0 0
          %509 = vmatprep.subr.bf16.mxu0 0
          %510 = vmatpush1.bf16.msra.mxu0 0
          %511 = vmatprep.subr.bf16.mxu0 0
          %512 = vmatpush1.bf16.msra.mxu0 0
          %513 = vmatprep.subr.bf16.mxu0 0
          %514 = vmatpush1.bf16.msra.mxu0 0
          %515 = vmatprep.subr.bf16.mxu0 0
          %516 = vmatpush1.bf16.msra.mxu0 0
          %517 = vmatprep.subr.bf16.mxu0 0
          %518 = vmatpush1.bf16.msra.mxu0 0
          %519 = vmatprep.subr.bf16.mxu0 0
          %520 = vmatpush1.bf16.msra.mxu0 0
          %521 = vmatprep.subr.bf16.mxu0 0
          %522 = vmatpush1.bf16.msra.mxu0 0
          %523 = vmatprep.subr.bf16.mxu0 0
          %524 = vmatpush1.bf16.msra.mxu0 0
          %525 = vmatprep.mubr.bf16.mxu0 0
          %526 = vmatmul.mubr.bf16.gmra.mrb[0].mxu0 %v446
          %v527 = vpop.f32.mrb[0].mxu0
          %v528 = vadd.f32 %v338, %v527
          %v529 = vpop.f32.mrb[0].mxu0
          %v530 = vpop.f32.mrb[0].mxu0
          %v531 = vadd.f32 %v338, %v530
          %v532 = vpop.f32.mrb[0].mxu0
          %533 = vmatprep.mubr.bf16.mxu0 0
          %534 = vmatmul.mubr.bf16.gmra.mrb[0].mxu0 %v449
          %v535 = vpop.f32.mrb[0].mxu0
          %v536 = vadd.f32 %v338, %v535
          %v537 = vpop.f32.mrb[0].mxu0
          %v538 = vpop.f32.mrb[0].mxu0
          %v539 = vadd.f32 %v338, %v538
          %v540 = vpop.f32.mrb[0].mxu0
          %541 = vmatprep.mubr.bf16.mxu0 0
          %542 = vmatmul.mubr.bf16.gmra.mrb[0].mxu0 %v452
          %v543 = vpop.f32.mrb[0].mxu0
          %v544 = vadd.f32 %v338, %v543
          %v545 = vpop.f32.mrb[0].mxu0
          %v546 = vpop.f32.mrb[0].mxu0
          %v547 = vadd.f32 %v338, %v546
          %v548 = vpop.f32.mrb[0].mxu0
          %549 = vmatprep.mubr.bf16.mxu0 0
          %550 = vmatmul.mubr.bf16.gmra.mrb[0].mxu0 %v455
          %v551 = vpop.f32.mrb[0].mxu0
          %v552 = vadd.f32 %v338, %v551
          %v553 = vpop.f32.mrb[0].mxu0
          %v554 = vpop.f32.mrb[0].mxu0
          %v555 = vadd.f32 %v338, %v554
          %v556 = vpop.f32.mrb[0].mxu0
          %557 = vmatprep.mubr.bf16.mxu0 0
          %558 = vmatmul.mubr.bf16.gmra.mrb[0].mxu0 %v458
          %v559 = vpop.f32.mrb[0].mxu0
          %v560 = vadd.f32 %v338, %v559
          %v561 = vpop.f32.mrb[0].mxu0
          %v562 = vpop.f32.mrb[0].mxu0
          %v563 = vadd.f32 %v338, %v562
          %v564 = vpop.f32.mrb[0].mxu0
          %565 = vmatprep.mubr.bf16.mxu0 0
          %566 = vmatmul.mubr.bf16.gmra.mrb[0].mxu0 %v461
          %v567 = vpop.f32.mrb[0].mxu0
          %v568 = vadd.f32 %v338, %v567
          %v569 = vpop.f32.mrb[0].mxu0
          %v570 = vpop.f32.mrb[0].mxu0
          %v571 = vadd.f32 %v338, %v570
          %v572 = vpop.f32.mrb[0].mxu0
          %573 = vmatprep.mubr.bf16.mxu0 0
          %574 = vmatmul.mubr.bf16.gmra.mrb[0].mxu0 %v464
          %v575 = vpop.f32.mrb[0].mxu0
          %v576 = vadd.f32 %v338, %v575
          %v577 = vpop.f32.mrb[0].mxu0
          %v578 = vpop.f32.mrb[0].mxu0
          %v579 = vadd.f32 %v338, %v578
          %v580 = vpop.f32.mrb[0].mxu0
          %581 = vmatprep.mubr.bf16.mxu0 0
          %582 = vmatmul.mubr.bf16.gmra.mrb[0].mxu0 %v467
          %v583 = vpop.f32.mrb[0].mxu0
          %v584 = vadd.f32 %v338, %v583
          %v585 = vpop.f32.mrb[0].mxu0
          %v586 = vpop.f32.mrb[0].mxu0
          %v587 = vadd.f32 %v338, %v586
          %v588 = vpop.f32.mrb[0].mxu0
          %589 = vmatprep.mubr.bf16.mxu0 0
          %590 = vmatmul.mubr.bf16.gmra.mrb[0].mxu0 %v470
          %v591 = vpop.f32.mrb[0].mxu0
          %v592 = vadd.f32 %v338, %v591
          %v593 = vpop.f32.mrb[0].mxu0
          %v594 = vpop.f32.mrb[0].mxu0
          %v595 = vadd.f32 %v338, %v594
          %v596 = vpop.f32.mrb[0].mxu0
          %597 = vmatprep.mubr.bf16.mxu0 0
          %598 = vmatmul.mubr.bf16.gmra.mrb[0].mxu0 %v473
          %v599 = vpop.f32.mrb[0].mxu0
          %v600 = vadd.f32 %v338, %v599
          %v601 = vpop.f32.mrb[0].mxu0
          %v602 = vpop.f32.mrb[0].mxu0
          %v603 = vadd.f32 %v338, %v602
          %v604 = vpop.f32.mrb[0].mxu0
          %605 = vmatprep.mubr.bf16.mxu0 0
          %606 = vmatmul.mubr.bf16.gmra.mrb[0].mxu0 %v476
          %v607 = vpop.f32.mrb[0].mxu0
          %v608 = vadd.f32 %v338, %v607
          %v609 = vpop.f32.mrb[0].mxu0
          %v610 = vpop.f32.mrb[0].mxu0
          %v611 = vadd.f32 %v338, %v610
          %v612 = vpop.f32.mrb[0].mxu0
          %613 = vmatprep.mubr.bf16.mxu0 0
          %614 = vmatmul.mubr.bf16.gmra.mrb[0].mxu0 %v479
          %v615 = vpop.f32.mrb[0].mxu0
          %v616 = vadd.f32 %v338, %v615
          %v617 = vpop.f32.mrb[0].mxu0
          %v618 = vpop.f32.mrb[0].mxu0
          %v619 = vadd.f32 %v338, %v618
          %v620 = vpop.f32.mrb[0].mxu0
          %621 = vmatprep.mubr.bf16.mxu0 0
          %622 = vmatmul.mubr.bf16.gmra.mrb[0].mxu0 %v482
          %v623 = vpop.f32.mrb[0].mxu0
          %v624 = vadd.f32 %v338, %v623
          %v625 = vpop.f32.mrb[0].mxu0
          %v626 = vpop.f32.mrb[0].mxu0
          %v627 = vadd.f32 %v338, %v626
          %v628 = vpop.f32.mrb[0].mxu0
          %629 = vmatprep.mubr.bf16.mxu0 0
          %630 = vmatmul.mubr.bf16.gmra.mrb[0].mxu0 %v485
          %v631 = vpop.f32.mrb[0].mxu0
          %v632 = vadd.f32 %v338, %v631
          %v633 = vpop.f32.mrb[0].mxu0
          %v634 = vpop.f32.mrb[0].mxu0
          %v635 = vadd.f32 %v338, %v634
          %v636 = vpop.f32.mrb[0].mxu0
          %637 = vmatprep.mubr.bf16.mxu0 0
          %638 = vmatmul.mubr.bf16.gmra.mrb[0].mxu0 %v488
          %v639 = vpop.f32.mrb[0].mxu0
          %v640 = vadd.f32 %v338, %v639
          %v641 = vpop.f32.mrb[0].mxu0
          %v642 = vpop.f32.mrb[0].mxu0
          %v643 = vadd.f32 %v338, %v642
          %v644 = vpop.f32.mrb[0].mxu0
          %645 = vmatprep.mubr.bf16.mxu0 0
          %646 = vmatmul.mubr.bf16.gmra.mrb[0].mxu0 %v491
          %v647 = vpop.f32.mrb[0].mxu0
          %v648 = vadd.f32 %v338, %v647
          %v649 = vpop.f32.mrb[0].mxu0
          %v650 = vpop.f32.mrb[0].mxu0
          %v651 = vadd.f32 %v338, %v650
          %v652 = vpop.f32.mrb[0].mxu0
          %653 = vdwg.mxu0
          %v654 = vpack.c.bf16 %v531, %v528
          %v655 = vpack.c.bf16 %v539, %v536
          %v656 = vpack.c.bf16 %v547, %v544
          %v657 = vpack.c.bf16 %v555, %v552
          %v658 = vpack.c.bf16 %v563, %v560
          %v659 = vpack.c.bf16 %v571, %v568
          %v660 = vpack.c.bf16 %v579, %v576
          %v661 = vpack.c.bf16 %v587, %v584
          %v662 = vpack.c.bf16 %v595, %v592
          %v663 = vpack.c.bf16 %v603, %v600
          %v664 = vpack.c.bf16 %v611, %v608
          %v665 = vpack.c.bf16 %v619, %v616
          %v666 = vpack.c.bf16 %v627, %v624
          %v667 = vpack.c.bf16 %v635, %v632
          %v668 = vpack.c.bf16 %v643, %v640
          %v669 = vpack.c.bf16 %v651, %v648
          %670 = vst [vmem:[#allocation2] sm:$0xff] %v654
          %671 = vst [vmem:[#allocation2 + $0x8] sm:$0xff] %v655
          %672 = vst [vmem:[#allocation2 + $0x10] sm:$0xff] %v656
          %673 = vst [vmem:[#allocation2 + $0x18] sm:$0xff] %v657
          %674 = vst [vmem:[#allocation2 + $0x20] sm:$0xff] %v658
          %675 = vst [vmem:[#allocation2 + $0x28] sm:$0xff] %v659
          %676 = vst [vmem:[#allocation2 + $0x30] sm:$0xff] %v660
          %677 = vst [vmem:[#allocation2 + $0x38] sm:$0xff] %v661
          %678 = vst [vmem:[#allocation2 + $0x40] sm:$0xff] %v662
          %679 = vst [vmem:[#allocation2 + $0x48] sm:$0xff] %v663
          %680 = vst [vmem:[#allocation2 + $0x50] sm:$0xff] %v664
          %681 = vst [vmem:[#allocation2 + $0x58] sm:$0xff] %v665
          %682 = vst [vmem:[#allocation2 + $0x60] sm:$0xff] %v666
          %683 = vst [vmem:[#allocation2 + $0x68] sm:$0xff] %v667
          %684 = vst [vmem:[#allocation2 + $0x70] sm:$0xff] %v668
          %685 = vst [vmem:[#allocation2 + $0x78] sm:$0xff] %v669
          %v686 = vld [vmem:[%s2 + $0x8] sm:$0xf]
          %v687 = vld [vmem:[%s2 + $0x14] sm:$0xf]
          %v688 = vld [vmem:[%s2 + $0x20] sm:$0xf]
          %v689 = vld [vmem:[%s2 + $0x2c] sm:$0xf]
          %v690 = vld [vmem:[%s2 + $0x38] sm:$0xf]
          %v691 = vld [vmem:[%s2 + $0x44] sm:$0xf]
          %v692 = vld [vmem:[%s2 + $0x50] sm:$0xf]
          %v693 = vld [vmem:[%s2 + $0x5c] sm:$0xf]
          %v694 = vld [vmem:[%s3 + $0x2] sm:$0x1]
          %v696 = vlaneseq
          %v697 = vshrl.u32 %v696, 7
          %v698 = vsub.s32 0, %v697
          %v699 = vrot.slane %v694, %v698
          %v709 = vunpack.c.l.b16 %v686
          %v710 = vunpack.c.l.b16 %v687
          %v711 = vunpack.c.l.b16 %v688
          %v712 = vunpack.c.l.b16 %v689
          %v713 = vunpack.c.l.b16 %v690
          %v714 = vunpack.c.l.b16 %v691
          %v715 = vunpack.c.l.b16 %v692
          %v716 = vunpack.c.l.b16 %v693
          %v717 = vpack.c.b16 %v710, %v709
          %v718 = vpack.c.b16 %v712, %v711
          %v719 = vpack.c.b16 %v714, %v713
          %v720 = vpack.c.b16 %v716, %v715
          %725 = vmatprep.subr.bf16.mxu0 0
          %726 = vmatpush1.bf16.msra.mxu0 %v717
          %727 = vmatprep.subr.bf16.mxu0 0
          %728 = vmatpush1.bf16.msra.mxu0 %v718
          %729 = vmatprep.subr.bf16.mxu0 0
          %730 = vmatpush1.bf16.msra.mxu0 %v719
          %731 = vmatprep.subr.bf16.mxu0 0
          %732 = vmatpush1.bf16.msra.mxu0 %v720
          %733 = vmatprep.subr.bf16.mxu0 0
          %734 = vmatpush1.bf16.msra.mxu0 0
          %735 = vmatprep.subr.bf16.mxu0 0
          %736 = vmatpush1.bf16.msra.mxu0 0
          %737 = vmatprep.subr.bf16.mxu0 0
          %738 = vmatpush1.bf16.msra.mxu0 0
          %739 = vmatprep.subr.bf16.mxu0 0
          %740 = vmatpush1.bf16.msra.mxu0 0
          %741 = vmatprep.subr.bf16.mxu0 0
          %742 = vmatpush1.bf16.msra.mxu0 0
          %743 = vmatprep.subr.bf16.mxu0 0
          %744 = vmatpush1.bf16.msra.mxu0 0
          %745 = vmatprep.subr.bf16.mxu0 0
          %746 = vmatpush1.bf16.msra.mxu0 0
          %747 = vmatprep.subr.bf16.mxu0 0
          %748 = vmatpush1.bf16.msra.mxu0 0
          %749 = vmatprep.subr.bf16.mxu0 0
          %750 = vmatpush1.bf16.msra.mxu0 0
          %751 = vmatprep.subr.bf16.mxu0 0
          %752 = vmatpush1.bf16.msra.mxu0 0
          %753 = vmatprep.subr.bf16.mxu0 0
          %754 = vmatpush1.bf16.msra.mxu0 0
          %755 = vmatprep.subr.bf16.mxu0 0
          %756 = vmatpush1.bf16.msra.mxu0 0
          %757 = vmatprep.mubr.bf16.mxu0 0
          %758 = vmatmul.mubr.bf16.gmra.mrb[0].mxu0 %v446
          %v759 = vpop.f32.mrb[0].mxu0
          %v760 = vadd.f32 %v699, %v759
          %v761 = vpop.f32.mrb[0].mxu0
          %v762 = vpop.f32.mrb[0].mxu0
          %v763 = vadd.f32 %v699, %v762
          %v764 = vpop.f32.mrb[0].mxu0
          %765 = vmatprep.mubr.bf16.mxu0 0
          %766 = vmatmul.mubr.bf16.gmra.mrb[0].mxu0 %v449
          %v767 = vpop.f32.mrb[0].mxu0
          %v768 = vadd.f32 %v699, %v767
          %v769 = vpop.f32.mrb[0].mxu0
          %v770 = vpop.f32.mrb[0].mxu0
          %v771 = vadd.f32 %v699, %v770
          %v772 = vpop.f32.mrb[0].mxu0
          %773 = vmatprep.mubr.bf16.mxu0 0
          %774 = vmatmul.mubr.bf16.gmra.mrb[0].mxu0 %v452
          %v775 = vpop.f32.mrb[0].mxu0
          %v776 = vadd.f32 %v699, %v775
          %v777 = vpop.f32.mrb[0].mxu0
          %v778 = vpop.f32.mrb[0].mxu0
          %v779 = vadd.f32 %v699, %v778
          %v780 = vpop.f32.mrb[0].mxu0
          %781 = vmatprep.mubr.bf16.mxu0 0
          %782 = vmatmul.mubr.bf16.gmra.mrb[0].mxu0 %v455
          %v783 = vpop.f32.mrb[0].mxu0
          %v784 = vadd.f32 %v699, %v783
          %v785 = vpop.f32.mrb[0].mxu0
          %v786 = vpop.f32.mrb[0].mxu0
          %v787 = vadd.f32 %v699, %v786
          %v788 = vpop.f32.mrb[0].mxu0
          %789 = vmatprep.mubr.bf16.mxu0 0
          %790 = vmatmul.mubr.bf16.gmra.mrb[0].mxu0 %v458
          %v791 = vpop.f32.mrb[0].mxu0
          %v792 = vadd.f32 %v699, %v791
          %v793 = vpop.f32.mrb[0].mxu0
          %v794 = vpop.f32.mrb[0].mxu0
          %v795 = vadd.f32 %v699, %v794
          %v796 = vpop.f32.mrb[0].mxu0
          %797 = vmatprep.mubr.bf16.mxu0 0
          %798 = vmatmul.mubr.bf16.gmra.mrb[0].mxu0 %v461
          %v799 = vpop.f32.mrb[0].mxu0
          %v800 = vadd.f32 %v699, %v799
          %v801 = vpop.f32.mrb[0].mxu0
          %v802 = vpop.f32.mrb[0].mxu0
          %v803 = vadd.f32 %v699, %v802
          %v804 = vpop.f32.mrb[0].mxu0
          %805 = vmatprep.mubr.bf16.mxu0 0
          %806 = vmatmul.mubr.bf16.gmra.mrb[0].mxu0 %v464
          %v807 = vpop.f32.mrb[0].mxu0
          %v808 = vadd.f32 %v699, %v807
          %v809 = vpop.f32.mrb[0].mxu0
          %v810 = vpop.f32.mrb[0].mxu0
          %v811 = vadd.f32 %v699, %v810
          %v812 = vpop.f32.mrb[0].mxu0
          %813 = vmatprep.mubr.bf16.mxu0 0
          %814 = vmatmul.mubr.bf16.gmra.mrb[0].mxu0 %v467
          %v815 = vpop.f32.mrb[0].mxu0
          %v816 = vadd.f32 %v699, %v815
          %v817 = vpop.f32.mrb[0].mxu0
          %v818 = vpop.f32.mrb[0].mxu0
          %v819 = vadd.f32 %v699, %v818
          %v820 = vpop.f32.mrb[0].mxu0
          %821 = vmatprep.mubr.bf16.mxu0 0
          %822 = vmatmul.mubr.bf16.gmra.mrb[0].mxu0 %v470
          %v823 = vpop.f32.mrb[0].mxu0
          %v824 = vadd.f32 %v699, %v823
          %v825 = vpop.f32.mrb[0].mxu0
          %v826 = vpop.f32.mrb[0].mxu0
          %v827 = vadd.f32 %v699, %v826
          %v828 = vpop.f32.mrb[0].mxu0
          %829 = vmatprep.mubr.bf16.mxu0 0
          %830 = vmatmul.mubr.bf16.gmra.mrb[0].mxu0 %v473
          %v831 = vpop.f32.mrb[0].mxu0
          %v832 = vadd.f32 %v699, %v831
          %v833 = vpop.f32.mrb[0].mxu0
          %v834 = vpop.f32.mrb[0].mxu0
          %v835 = vadd.f32 %v699, %v834
          %v836 = vpop.f32.mrb[0].mxu0
          %837 = vmatprep.mubr.bf16.mxu0 0
          %838 = vmatmul.mubr.bf16.gmra.mrb[0].mxu0 %v476
          %v839 = vpop.f32.mrb[0].mxu0
          %v840 = vadd.f32 %v699, %v839
          %v841 = vpop.f32.mrb[0].mxu0
          %v842 = vpop.f32.mrb[0].mxu0
          %v843 = vadd.f32 %v699, %v842
          %v844 = vpop.f32.mrb[0].mxu0
          %845 = vmatprep.mubr.bf16.mxu0 0
          %846 = vmatmul.mubr.bf16.gmra.mrb[0].mxu0 %v479
          %v847 = vpop.f32.mrb[0].mxu0
          %v848 = vadd.f32 %v699, %v847
          %v849 = vpop.f32.mrb[0].mxu0
          %v850 = vpop.f32.mrb[0].mxu0
          %v851 = vadd.f32 %v699, %v850
          %v852 = vpop.f32.mrb[0].mxu0
          %853 = vmatprep.mubr.bf16.mxu0 0
          %854 = vmatmul.mubr.bf16.gmra.mrb[0].mxu0 %v482
          %v855 = vpop.f32.mrb[0].mxu0
          %v856 = vadd.f32 %v699, %v855
          %v857 = vpop.f32.mrb[0].mxu0
          %v858 = vpop.f32.mrb[0].mxu0
          %v859 = vadd.f32 %v699, %v858
          %v860 = vpop.f32.mrb[0].mxu0
          %861 = vmatprep.mubr.bf16.mxu0 0
          %862 = vmatmul.mubr.bf16.gmra.mrb[0].mxu0 %v485
          %v863 = vpop.f32.mrb[0].mxu0
          %v864 = vadd.f32 %v699, %v863
          %v865 = vpop.f32.mrb[0].mxu0
          %v866 = vpop.f32.mrb[0].mxu0
          %v867 = vadd.f32 %v699, %v866
          %v868 = vpop.f32.mrb[0].mxu0
          %869 = vmatprep.mubr.bf16.mxu0 0
          %870 = vmatmul.mubr.bf16.gmra.mrb[0].mxu0 %v488
          %v871 = vpop.f32.mrb[0].mxu0
          %v872 = vadd.f32 %v699, %v871
          %v873 = vpop.f32.mrb[0].mxu0
          %v874 = vpop.f32.mrb[0].mxu0
          %v875 = vadd.f32 %v699, %v874
          %v876 = vpop.f32.mrb[0].mxu0
          %877 = vmatprep.mubr.bf16.mxu0 0
          %878 = vmatmul.mubr.bf16.gmra.mrb[0].mxu0 %v491
          %v879 = vpop.f32.mrb[0].mxu0
          %v880 = vadd.f32 %v699, %v879
          %v881 = vpop.f32.mrb[0].mxu0
          %v882 = vpop.f32.mrb[0].mxu0
          %v883 = vadd.f32 %v699, %v882
          %v884 = vpop.f32.mrb[0].mxu0
          %885 = vdwg.mxu0
          %v886 = vpack.c.bf16 %v763, %v760
          %v887 = vpack.c.bf16 %v771, %v768
          %v888 = vpack.c.bf16 %v779, %v776
          %v889 = vpack.c.bf16 %v787, %v784
          %v890 = vpack.c.bf16 %v795, %v792
          %v891 = vpack.c.bf16 %v803, %v800
          %v892 = vpack.c.bf16 %v811, %v808
          %v893 = vpack.c.bf16 %v819, %v816
          %v894 = vpack.c.bf16 %v827, %v824
          %v895 = vpack.c.bf16 %v835, %v832
          %v896 = vpack.c.bf16 %v843, %v840
          %v897 = vpack.c.bf16 %v851, %v848
          %v898 = vpack.c.bf16 %v859, %v856
          %v899 = vpack.c.bf16 %v867, %v864
          %v900 = vpack.c.bf16 %v875, %v872
          %v901 = vpack.c.bf16 %v883, %v880
          %902 = vst [vmem:[#allocation3] sm:$0xff] %v886
          %903 = vst [vmem:[#allocation3 + $0x8] sm:$0xff] %v887
          %904 = vst [vmem:[#allocation3 + $0x10] sm:$0xff] %v888
          %905 = vst [vmem:[#allocation3 + $0x18] sm:$0xff] %v889
          %906 = vst [vmem:[#allocation3 + $0x20] sm:$0xff] %v890
          %907 = vst [vmem:[#allocation3 + $0x28] sm:$0xff] %v891
          %908 = vst [vmem:[#allocation3 + $0x30] sm:$0xff] %v892
          %909 = vst [vmem:[#allocation3 + $0x38] sm:$0xff] %v893
          %910 = vst [vmem:[#allocation3 + $0x40] sm:$0xff] %v894
          %911 = vst [vmem:[#allocation3 + $0x48] sm:$0xff] %v895
          %912 = vst [vmem:[#allocation3 + $0x50] sm:$0xff] %v896
          %913 = vst [vmem:[#allocation3 + $0x58] sm:$0xff] %v897
          %914 = vst [vmem:[#allocation3 + $0x60] sm:$0xff] %v898
          %915 = vst [vmem:[#allocation3 + $0x68] sm:$0xff] %v899
          %916 = vst [vmem:[#allocation3 + $0x70] sm:$0xff] %v900
          %917 = vst [vmem:[#allocation3 + $0x78] sm:$0xff] %v901
        $region40: #{tpu_custom_call.1} parent=35 // pred_fallthru
          _
        %v918 = vld [vmem:[%s279] sm:$0xf]
        %v919 = vld [vmem:[%s279 + $0x4] sm:$0xf]
        %v920 = vld [vmem:[%s279 + $0x8] sm:$0xf]
        %v921 = vld [vmem:[%s279 + $0xc] sm:$0xf]
        %v922 = vld [vmem:[%s279 + $0x10] sm:$0xf]
        %v923 = vld [vmem:[%s279 + $0x14] sm:$0xf]
        %v924 = vld [vmem:[%s279 + $0x18] sm:$0xf]
        %v925 = vld [vmem:[%s279 + $0x1c] sm:$0xf]
        %v926 = vld [vmem:[%s279 + $0x20] sm:$0xf]
        %v927 = vld [vmem:[%s279 + $0x24] sm:$0xf]
        %v928 = vld [vmem:[%s279 + $0x28] sm:$0xf]
        %v929 = vld [vmem:[%s279 + $0x2c] sm:$0xf]
        %v930 = vld [vmem:[%s279 + $0x30] sm:$0xf]
        %v931 = vld [vmem:[%s279 + $0x34] sm:$0xf]
        %v932 = vld [vmem:[%s279 + $0x38] sm:$0xf]
        %v933 = vld [vmem:[%s279 + $0x3c] sm:$0xf]
        %v934 = vld [vmem:[%s2] sm:$0xf]
        %v935 = vld [vmem:[%s2 + $0xc] sm:$0xf]
        %v936 = vld [vmem:[%s2 + $0x18] sm:$0xf]
        %v937 = vld [vmem:[%s2 + $0x24] sm:$0xf]
        %v938 = vld [vmem:[%s2 + $0x30] sm:$0xf]
        %v939 = vld [vmem:[%s2 + $0x3c] sm:$0xf]
        %v940 = vld [vmem:[%s2 + $0x48] sm:$0xf]
        %v941 = vld [vmem:[%s2 + $0x54] sm:$0xf]
        %v942 = vld [vmem:[%s3] sm:$0x1]
        %v944 = vlaneseq
        %v945 = vshrl.u32 %v944, 7
        %v946 = vsub.s32 0, %v945
        %v947 = vrot.slane %v942, %v946
        %v965 = vunpack.c.l.b16 %v918
        %v966 = vunpack.c.l.b16 %v919
        %v967 = vunpack.c.l.b16 %v920
        %v968 = vunpack.c.l.b16 %v921
        %v969 = vunpack.c.l.b16 %v922
        %v970 = vunpack.c.l.b16 %v923
        %v971 = vunpack.c.l.b16 %v924
        %v972 = vunpack.c.l.b16 %v925
        %v973 = vunpack.c.l.b16 %v926
        %v974 = vunpack.c.l.b16 %v927
        %v975 = vunpack.c.l.b16 %v928
        %v976 = vunpack.c.l.b16 %v929
        %v977 = vunpack.c.l.b16 %v930
        %v978 = vunpack.c.l.b16 %v931
        %v979 = vunpack.c.l.b16 %v932
        %v980 = vunpack.c.l.b16 %v933
        %v981 = vpack.c.b16 %v966, %v965
        %v982 = vpack.c.b16 %v968, %v967
        %v983 = vpack.c.b16 %v970, %v969
        %v984 = vpack.c.b16 %v972, %v971
        %v985 = vpack.c.b16 %v974, %v973
        %v986 = vpack.c.b16 %v976, %v975
        %v987 = vpack.c.b16 %v978, %v977
        %v988 = vpack.c.b16 %v980, %v979
        %v997 = vunpack.c.l.b16 %v934
        %v998 = vunpack.c.l.b16 %v935
        %v999 = vunpack.c.l.b16 %v936
        %v1000 = vunpack.c.l.b16 %v937
        %v1001 = vunpack.c.l.b16 %v938
        %v1002 = vunpack.c.l.b16 %v939
        %v1003 = vunpack.c.l.b16 %v940
        %v1004 = vunpack.c.l.b16 %v941
        %v1005 = vpack.c.b16 %v998, %v997
        %v1006 = vpack.c.b16 %v1000, %v999
        %v1007 = vpack.c.b16 %v1002, %v1001
        %v1008 = vpack.c.b16 %v1004, %v1003
        %vm1013 = vcmask 523264
        %v1015 = vsel %vm1013, %v981, 0
        %v1018 = vsel %vm1013, %v982, 0
        %v1021 = vsel %vm1013, %v983, 0
        %v1024 = vsel %vm1013, %v984, 0
        %v1027 = vsel %vm1013, %v985, 0
        %v1030 = vsel %vm1013, %v986, 0
        %v1033 = vsel %vm1013, %v987, 0
        %v1036 = vsel %vm1013, %v988, 0
        %1038 = vmatprep.subr.bf16.mxu0 0
        %1039 = vmatpush1.bf16.msra.mxu0 %v1005
        %1040 = vmatprep.subr.bf16.mxu0 0
        %1041 = vmatpush1.bf16.msra.mxu0 %v1006
        %1042 = vmatprep.subr.bf16.mxu0 0
        %1043 = vmatpush1.bf16.msra.mxu0 %v1007
        %1044 = vmatprep.subr.bf16.mxu0 0
        %1045 = vmatpush1.bf16.msra.mxu0 %v1008
        %1046 = vmatprep.subr.bf16.mxu0 0
        %1047 = vmatpush1.bf16.msra.mxu0 0
        %1048 = vmatprep.subr.bf16.mxu0 0
        %1049 = vmatpush1.bf16.msra.mxu0 0
        %1050 = vmatprep.subr.bf16.mxu0 0
        %1051 = vmatpush1.bf16.msra.mxu0 0
        %1052 = vmatprep.subr.bf16.mxu0 0
        %1053 = vmatpush1.bf16.msra.mxu0 0
        %1054 = vmatprep.subr.bf16.mxu0 0
        %1055 = vmatpush1.bf16.msra.mxu0 0
        %1056 = vmatprep.subr.bf16.mxu0 0
        %1057 = vmatpush1.bf16.msra.mxu0 0
        %1058 = vmatprep.subr.bf16.mxu0 0
        %1059 = vmatpush1.bf16.msra.mxu0 0
        %1060 = vmatprep.subr.bf16.mxu0 0
        %1061 = vmatpush1.bf16.msra.mxu0 0
        %1062 = vmatprep.subr.bf16.mxu0 0
        %1063 = vmatpush1.bf16.msra.mxu0 0
        %1064 = vmatprep.subr.bf16.mxu0 0
        %1065 = vmatpush1.bf16.msra.mxu0 0
        %1066 = vmatprep.subr.bf16.mxu0 0
        %1067 = vmatpush1.bf16.msra.mxu0 0
        %1068 = vmatprep.subr.bf16.mxu0 0
        %1069 = vmatpush1.bf16.msra.mxu0 0
        %1070 = vmatprep.mubr.bf16.mxu0 0
        %1071 = vmatmul.mubr.bf16.gmra.mrb[0].mxu0 %v1015
        %v1072 = vpop.f32.mrb[0].mxu0
        %v1073 = vadd.f32 %v947, %v1072
        %v1074 = vpop.f32.mrb[0].mxu0
        %v1075 = vpop.f32.mrb[0].mxu0
        %v1076 = vadd.f32 %v947, %v1075
        %v1077 = vpop.f32.mrb[0].mxu0
        %1078 = vmatprep.mubr.bf16.mxu0 0
        %1079 = vmatmul.mubr.bf16.gmra.mrb[0].mxu0 %v1018
        %v1080 = vpop.f32.mrb[0].mxu0
        %v1081 = vadd.f32 %v947, %v1080
        %v1082 = vpop.f32.mrb[0].mxu0
        %v1083 = vpop.f32.mrb[0].mxu0
        %v1084 = vadd.f32 %v947, %v1083
        %v1085 = vpop.f32.mrb[0].mxu0
        %1086 = vmatprep.mubr.bf16.mxu0 0
        %1087 = vmatmul.mubr.bf16.gmra.mrb[0].mxu0 %v1021
        %v1088 = vpop.f32.mrb[0].mxu0
        %v1089 = vadd.f32 %v947, %v1088
        %v1090 = vpop.f32.mrb[0].mxu0
        %v1091 = vpop.f32.mrb[0].mxu0
        %v1092 = vadd.f32 %v947, %v1091
        %v1093 = vpop.f32.mrb[0].mxu0
        %1094 = vmatprep.mubr.bf16.mxu0 0
        %1095 = vmatmul.mubr.bf16.gmra.mrb[0].mxu0 %v1024
        %v1096 = vpop.f32.mrb[0].mxu0
        %v1097 = vadd.f32 %v947, %v1096
        %v1098 = vpop.f32.mrb[0].mxu0
        %v1099 = vpop.f32.mrb[0].mxu0
        %v1100 = vadd.f32 %v947, %v1099
        %v1101 = vpop.f32.mrb[0].mxu0
        %1102 = vmatprep.mubr.bf16.mxu0 0
        %1103 = vmatmul.mubr.bf16.gmra.mrb[0].mxu0 %v1027
        %v1104 = vpop.f32.mrb[0].mxu0
        %v1105 = vadd.f32 %v947, %v1104
        %v1106 = vpop.f32.mrb[0].mxu0
        %v1107 = vpop.f32.mrb[0].mxu0
        %v1108 = vadd.f32 %v947, %v1107
        %v1109 = vpop.f32.mrb[0].mxu0
        %1110 = vmatprep.mubr.bf16.mxu0 0
        %1111 = vmatmul.mubr.bf16.gmra.mrb[0].mxu0 %v1030
        %v1112 = vpop.f32.mrb[0].mxu0
        %v1113 = vadd.f32 %v947, %v1112
        %v1114 = vpop.f32.mrb[0].mxu0
        %v1115 = vpop.f32.mrb[0].mxu0
        %v1116 = vadd.f32 %v947, %v1115
        %v1117 = vpop.f32.mrb[0].mxu0
        %1118 = vmatprep.mubr.bf16.mxu0 0
        %1119 = vmatmul.mubr.bf16.gmra.mrb[0].mxu0 %v1033
        %v1120 = vpop.f32.mrb[0].mxu0
        %v1121 = vadd.f32 %v947, %v1120
        %v1122 = vpop.f32.mrb[0].mxu0
        %v1123 = vpop.f32.mrb[0].mxu0
        %v1124 = vadd.f32 %v947, %v1123
        %v1125 = vpop.f32.mrb[0].mxu0
        %1126 = vmatprep.mubr.bf16.mxu0 0
        %1127 = vmatmul.mubr.bf16.gmra.mrb[0].mxu0 %v1036
        %v1128 = vpop.f32.mrb[0].mxu0
        %v1129 = vadd.f32 %v947, %v1128
        %v1130 = vpop.f32.mrb[0].mxu0
        %v1131 = vpop.f32.mrb[0].mxu0
        %v1132 = vadd.f32 %v947, %v1131
        %v1133 = vpop.f32.mrb[0].mxu0
        %1134 = vdwg.mxu0
        %v1135 = vmul.f32 %v1073, 0.088388346
        %v1136 = vmul.f32 %v1076, 0.088388346
        %v1137 = vmul.f32 %v1081, 0.088388346
        %v1138 = vmul.f32 %v1084, 0.088388346
        %v1139 = vmul.f32 %v1089, 0.088388346
        %v1140 = vmul.f32 %v1092, 0.088388346
        %v1141 = vmul.f32 %v1097, 0.088388346
        %v1142 = vmul.f32 %v1100, 0.088388346
        %v1143 = vmul.f32 %v1105, 0.088388346
        %v1144 = vmul.f32 %v1108, 0.088388346
        %v1145 = vmul.f32 %v1113, 0.088388346
        %v1146 = vmul.f32 %v1116, 0.088388346
        %v1147 = vmul.f32 %v1121, 0.088388346
        %v1148 = vmul.f32 %v1124, 0.088388346
        %v1149 = vmul.f32 %v1129, 0.088388346
        %v1150 = vmul.f32 %v1132, 0.088388346
        %v1151 = vpack.c.bf16 %v1136, %v1135
        %v1152 = vpack.c.bf16 %v1138, %v1137
        %v1153 = vpack.c.bf16 %v1140, %v1139
        %v1154 = vpack.c.bf16 %v1142, %v1141
        %v1155 = vpack.c.bf16 %v1144, %v1143
        %v1156 = vpack.c.bf16 %v1146, %v1145
        %v1157 = vpack.c.bf16 %v1148, %v1147
        %v1158 = vpack.c.bf16 %v1150, %v1149
        %v1159 = vld [vmem:[#allocation2] sm:$0xff]
        %v1160 = vld [vmem:[#allocation2 + $0x8] sm:$0xff]
        %v1161 = vld [vmem:[#allocation2 + $0x10] sm:$0xff]
        %v1162 = vld [vmem:[#allocation2 + $0x18] sm:$0xff]
        %v1163 = vld [vmem:[#allocation2 + $0x20] sm:$0xff]
        %v1164 = vld [vmem:[#allocation2 + $0x28] sm:$0xff]
        %v1165 = vld [vmem:[#allocation2 + $0x30] sm:$0xff]
        %v1166 = vld [vmem:[#allocation2 + $0x38] sm:$0xff]
        %v1167 = vld [vmem:[#allocation2 + $0x40] sm:$0xff]
        %v1168 = vld [vmem:[#allocation2 + $0x48] sm:$0xff]
        %v1169 = vld [vmem:[#allocation2 + $0x50] sm:$0xff]
        %v1170 = vld [vmem:[#allocation2 + $0x58] sm:$0xff]
        %v1171 = vld [vmem:[#allocation2 + $0x60] sm:$0xff]
        %v1172 = vld [vmem:[#allocation2 + $0x68] sm:$0xff]
        %v1173 = vld [vmem:[#allocation2 + $0x70] sm:$0xff]
        %v1174 = vld [vmem:[#allocation2 + $0x78] sm:$0xff]
        %1175 = vmatprep.subr.bf16.mxu0 0
        %1176 = vmatpush1.bf16.xpose.msra.mxu0 %v1159
        %1177 = vmatprep.subr.bf16.mxu0 0
        %1178 = vmatpush1.bf16.xpose.msra.mxu0 %v1160
        %1179 = vmatprep.subr.bf16.mxu0 0
        %1180 = vmatpush1.bf16.xpose.msra.mxu0 %v1161
        %1181 = vmatprep.subr.bf16.mxu0 0
        %1182 = vmatpush1.bf16.xpose.msra.mxu0 %v1162
        %1183 = vmatprep.subr.bf16.mxu0 0
        %1184 = vmatpush1.bf16.xpose.msra.mxu0 %v1163
        %1185 = vmatprep.subr.bf16.mxu0 0
        %1186 = vmatpush1.bf16.xpose.msra.mxu0 %v1164
        %1187 = vmatprep.subr.bf16.mxu0 0
        %1188 = vmatpush1.bf16.xpose.msra.mxu0 %v1165
        %1189 = vmatprep.subr.bf16.mxu0 0
        %1190 = vmatpush1.bf16.xpose.msra.mxu0 %v1166
        %1191 = vmatprep.subr.bf16.mxu0 0
        %1192 = vmatpush1.bf16.xpose.msra.mxu0 %v1167
        %1193 = vmatprep.subr.bf16.mxu0 0
        %1194 = vmatpush1.bf16.xpose.msra.mxu0 %v1168
        %1195 = vmatprep.subr.bf16.mxu0 0
        %1196 = vmatpush1.bf16.xpose.msra.mxu0 %v1169
        %1197 = vmatprep.subr.bf16.mxu0 0
        %1198 = vmatpush1.bf16.xpose.msra.mxu0 %v1170
        %1199 = vmatprep.subr.bf16.mxu0 0
        %1200 = vmatpush1.bf16.xpose.msra.mxu0 %v1171
        %1201 = vmatprep.subr.bf16.mxu0 0
        %1202 = vmatpush1.bf16.xpose.msra.mxu0 %v1172
        %1203 = vmatprep.subr.bf16.mxu0 0
        %1204 = vmatpush1.bf16.xpose.msra.mxu0 %v1173
        %1205 = vmatprep.subr.bf16.mxu0 0
        %1206 = vmatpush1.bf16.xpose.msra.mxu0 %v1174
        %1207 = vmatprep.mubr.bf16.mxu0 0
        %1208 = vmatmul.mubr.bf16.gmra.mrb[0].mxu0 %v1151
        %v1209 = vpop.f32.mrb[0].mxu0
        %v1210 = vadd.f32 0.0, %v1209
        %v1211 = vpop.f32.mrb[0].mxu0
        %v1212 = vadd.f32 0.0, %v1211
        %v1213 = vpop.f32.mrb[0].mxu0
        %v1214 = vadd.f32 0.0, %v1213
        %v1215 = vpop.f32.mrb[0].mxu0
        %v1216 = vadd.f32 0.0, %v1215
        %1217 = vmatprep.mubr.bf16.mxu0 0
        %1218 = vmatmul.mubr.bf16.gmra.mrb[0].mxu0 %v1152
        %v1219 = vpop.f32.mrb[0].mxu0
        %v1220 = vadd.f32 0.0, %v1219
        %v1221 = vpop.f32.mrb[0].mxu0
        %v1222 = vadd.f32 0.0, %v1221
        %v1223 = vpop.f32.mrb[0].mxu0
        %v1224 = vadd.f32 0.0, %v1223
        %v1225 = vpop.f32.mrb[0].mxu0
        %v1226 = vadd.f32 0.0, %v1225
        %1227 = vmatprep.mubr.bf16.mxu0 0
        %1228 = vmatmul.mubr.bf16.gmra.mrb[0].mxu0 %v1153
        %v1229 = vpop.f32.mrb[0].mxu0
        %v1230 = vadd.f32 0.0, %v1229
        %v1231 = vpop.f32.mrb[0].mxu0
        %v1232 = vadd.f32 0.0, %v1231
        %v1233 = vpop.f32.mrb[0].mxu0
        %v1234 = vadd.f32 0.0, %v1233
        %v1235 = vpop.f32.mrb[0].mxu0
        %v1236 = vadd.f32 0.0, %v1235
        %1237 = vmatprep.mubr.bf16.mxu0 0
        %1238 = vmatmul.mubr.bf16.gmra.mrb[0].mxu0 %v1154
        %v1239 = vpop.f32.mrb[0].mxu0
        %v1240 = vadd.f32 0.0, %v1239
        %v1241 = vpop.f32.mrb[0].mxu0
        %v1242 = vadd.f32 0.0, %v1241
        %v1243 = vpop.f32.mrb[0].mxu0
        %v1244 = vadd.f32 0.0, %v1243
        %v1245 = vpop.f32.mrb[0].mxu0
        %v1246 = vadd.f32 0.0, %v1245
        %1247 = vmatprep.mubr.bf16.mxu0 0
        %1248 = vmatmul.mubr.bf16.gmra.mrb[0].mxu0 %v1155
        %v1249 = vpop.f32.mrb[0].mxu0
        %v1250 = vadd.f32 0.0, %v1249
        %v1251 = vpop.f32.mrb[0].mxu0
        %v1252 = vadd.f32 0.0, %v1251
        %v1253 = vpop.f32.mrb[0].mxu0
        %v1254 = vadd.f32 0.0, %v1253
        %v1255 = vpop.f32.mrb[0].mxu0
        %v1256 = vadd.f32 0.0, %v1255
        %1257 = vmatprep.mubr.bf16.mxu0 0
        %1258 = vmatmul.mubr.bf16.gmra.mrb[0].mxu0 %v1156
        %v1259 = vpop.f32.mrb[0].mxu0
        %v1260 = vadd.f32 0.0, %v1259
        %v1261 = vpop.f32.mrb[0].mxu0
        %v1262 = vadd.f32 0.0, %v1261
        %v1263 = vpop.f32.mrb[0].mxu0
        %v1264 = vadd.f32 0.0, %v1263
        %v1265 = vpop.f32.mrb[0].mxu0
        %v1266 = vadd.f32 0.0, %v1265
        %1267 = vmatprep.mubr.bf16.mxu0 0
        %1268 = vmatmul.mubr.bf16.gmra.mrb[0].mxu0 %v1157
        %v1269 = vpop.f32.mrb[0].mxu0
        %v1270 = vadd.f32 0.0, %v1269
        %v1271 = vpop.f32.mrb[0].mxu0
        %v1272 = vadd.f32 0.0, %v1271
        %v1273 = vpop.f32.mrb[0].mxu0
        %v1274 = vadd.f32 0.0, %v1273
        %v1275 = vpop.f32.mrb[0].mxu0
        %v1276 = vadd.f32 0.0, %v1275
        %1277 = vmatprep.mubr.bf16.mxu0 0
        %1278 = vmatmul.mubr.bf16.gmra.mrb[0].mxu0 %v1158
        %v1279 = vpop.f32.mrb[0].mxu0
        %v1280 = vadd.f32 0.0, %v1279
        %v1281 = vpop.f32.mrb[0].mxu0
        %v1282 = vadd.f32 0.0, %v1281
        %v1283 = vpop.f32.mrb[0].mxu0
        %v1284 = vadd.f32 0.0, %v1283
        %v1285 = vpop.f32.mrb[0].mxu0
        %v1286 = vadd.f32 0.0, %v1285
        %1287 = vdwg.mxu0
        %v1288 = vmax.f32 %v1210, %v1212
        %1289 = vmax.xlane.f32.xlu0 %v1288
        %v1290 = vpop.xlane.xlu0 %1289
        %v1291 = vmax.f32 %v1214, %v1216
        %1292 = vmax.xlane.f32.xlu0 %v1291
        %v1293 = vpop.xlane.xlu0 %1292
        %v1294 = vmax.f32 %v1220, %v1222
        %1295 = vmax.xlane.f32.xlu0 %v1294
        %v1296 = vpop.xlane.xlu0 %1295
        %v1297 = vmax.f32 %v1224, %v1226
        %1298 = vmax.xlane.f32.xlu0 %v1297
        %v1299 = vpop.xlane.xlu0 %1298
        %v1300 = vmax.f32 %v1230, %v1232
        %1301 = vmax.xlane.f32.xlu0 %v1300
        %v1302 = vpop.xlane.xlu0 %1301
        %v1303 = vmax.f32 %v1234, %v1236
        %1304 = vmax.xlane.f32.xlu0 %v1303
        %v1305 = vpop.xlane.xlu0 %1304
        %v1306 = vmax.f32 %v1240, %v1242
        %1307 = vmax.xlane.f32.xlu0 %v1306
        %v1308 = vpop.xlane.xlu0 %1307
        %v1309 = vmax.f32 %v1244, %v1246
        %1310 = vmax.xlane.f32.xlu0 %v1309
        %v1311 = vpop.xlane.xlu0 %1310
        %v1312 = vmax.f32 %v1250, %v1252
        %1313 = vmax.xlane.f32.xlu0 %v1312
        %v1314 = vpop.xlane.xlu0 %1313
        %v1315 = vmax.f32 %v1254, %v1256
        %1316 = vmax.xlane.f32.xlu0 %v1315
        %v1317 = vpop.xlane.xlu0 %1316
        %v1318 = vmax.f32 %v1260, %v1262
        %1319 = vmax.xlane.f32.xlu0 %v1318
        %v1320 = vpop.xlane.xlu0 %1319
        %v1321 = vmax.f32 %v1264, %v1266
        %1322 = vmax.xlane.f32.xlu0 %v1321
        %v1323 = vpop.xlane.xlu0 %1322
        %v1324 = vmax.f32 %v1270, %v1272
        %1325 = vmax.xlane.f32.xlu0 %v1324
        %v1326 = vpop.xlane.xlu0 %1325
        %v1327 = vmax.f32 %v1274, %v1276
        %1328 = vmax.xlane.f32.xlu0 %v1327
        %v1329 = vpop.xlane.xlu0 %1328
        %v1330 = vmax.f32 %v1280, %v1282
        %1331 = vmax.xlane.f32.xlu0 %v1330
        %v1332 = vpop.xlane.xlu0 %1331
        %v1333 = vmax.f32 %v1284, %v1286
        %1334 = vmax.xlane.f32.xlu0 %v1333
        %v1335 = vpop.xlane.xlu0 %1334
        %v1336 = vsub.f32 %v1210, %v1290
        %v1337 = vsub.f32 %v1212, %v1290
        %v1338 = vsub.f32 %v1214, %v1293
        %v1339 = vsub.f32 %v1216, %v1293
        %v1340 = vsub.f32 %v1220, %v1296
        %v1341 = vsub.f32 %v1222, %v1296
        %v1342 = vsub.f32 %v1224, %v1299
        %v1343 = vsub.f32 %v1226, %v1299
        %v1344 = vsub.f32 %v1230, %v1302
        %v1345 = vsub.f32 %v1232, %v1302
        %v1346 = vsub.f32 %v1234, %v1305
        %v1347 = vsub.f32 %v1236, %v1305
        %v1348 = vsub.f32 %v1240, %v1308
        %v1349 = vsub.f32 %v1242, %v1308
        %v1350 = vsub.f32 %v1244, %v1311
        %v1351 = vsub.f32 %v1246, %v1311
        %v1352 = vsub.f32 %v1250, %v1314
        %v1353 = vsub.f32 %v1252, %v1314
        %v1354 = vsub.f32 %v1254, %v1317
        %v1355 = vsub.f32 %v1256, %v1317
        %v1356 = vsub.f32 %v1260, %v1320
        %v1357 = vsub.f32 %v1262, %v1320
        %v1358 = vsub.f32 %v1264, %v1323
        %v1359 = vsub.f32 %v1266, %v1323
        %v1360 = vsub.f32 %v1270, %v1326
        %v1361 = vsub.f32 %v1272, %v1326
        %v1362 = vsub.f32 %v1274, %v1329
        %v1363 = vsub.f32 %v1276, %v1329
        %v1364 = vsub.f32 %v1280, %v1332
        %v1365 = vsub.f32 %v1282, %v1332
        %v1366 = vsub.f32 %v1284, %v1335
        %v1367 = vsub.f32 %v1286, %v1335
        %v1368 = vmul.f32 %v1336, 1.442695
        %v1369 = vpow.pop %v1368
        %v1370 = vmul.f32 %v1337, 1.442695
        %v1371 = vpow.pop %v1370
        %v1372 = vmul.f32 %v1338, 1.442695
        %v1373 = vpow.pop %v1372
        %v1374 = vmul.f32 %v1339, 1.442695
        %v1375 = vpow.pop %v1374
        %v1376 = vmul.f32 %v1340, 1.442695
        %v1377 = vpow.pop %v1376
        %v1378 = vmul.f32 %v1341, 1.442695
        %v1379 = vpow.pop %v1378
        %v1380 = vmul.f32 %v1342, 1.442695
        %v1381 = vpow.pop %v1380
        %v1382 = vmul.f32 %v1343, 1.442695
        %v1383 = vpow.pop %v1382
        %v1384 = vmul.f32 %v1344, 1.442695
        %v1385 = vpow.pop %v1384
        %v1386 = vmul.f32 %v1345, 1.442695
        %v1387 = vpow.pop %v1386
        %v1388 = vmul.f32 %v1346, 1.442695
        %v1389 = vpow.pop %v1388
        %v1390 = vmul.f32 %v1347, 1.442695
        %v1391 = vpow.pop %v1390
        %v1392 = vmul.f32 %v1348, 1.442695
        %v1393 = vpow.pop %v1392
        %v1394 = vmul.f32 %v1349, 1.442695
        %v1395 = vpow.pop %v1394
        %v1396 = vmul.f32 %v1350, 1.442695
        %v1397 = vpow.pop %v1396
        %v1398 = vmul.f32 %v1351, 1.442695
        %v1399 = vpow.pop %v1398
        %v1400 = vmul.f32 %v1352, 1.442695
        %v1401 = vpow.pop %v1400
        %v1402 = vmul.f32 %v1353, 1.442695
        %v1403 = vpow.pop %v1402
        %v1404 = vmul.f32 %v1354, 1.442695
        %v1405 = vpow.pop %v1404
        %v1406 = vmul.f32 %v1355, 1.442695
        %v1407 = vpow.pop %v1406
        %v1408 = vmul.f32 %v1356, 1.442695
        %v1409 = vpow.pop %v1408
        %v1410 = vmul.f32 %v1357, 1.442695
        %v1411 = vpow.pop %v1410
        %v1412 = vmul.f32 %v1358, 1.442695
        %v1413 = vpow.pop %v1412
        %v1414 = vmul.f32 %v1359, 1.442695
        %v1415 = vpow.pop %v1414
        %v1416 = vmul.f32 %v1360, 1.442695
        %v1417 = vpow.pop %v1416
        %v1418 = vmul.f32 %v1361, 1.442695
        %v1419 = vpow.pop %v1418
        %v1420 = vmul.f32 %v1362, 1.442695
        %v1421 = vpow.pop %v1420
        %v1422 = vmul.f32 %v1363, 1.442695
        %v1423 = vpow.pop %v1422
        %v1424 = vmul.f32 %v1364, 1.442695
        %v1425 = vpow.pop %v1424
        %v1426 = vmul.f32 %v1365, 1.442695
        %v1427 = vpow.pop %v1426
        %v1428 = vmul.f32 %v1366, 1.442695
        %v1429 = vpow.pop %v1428
        %v1430 = vmul.f32 %v1367, 1.442695
        %v1431 = vpow.pop %v1430
        %v1432 = vadd.f32 %v1369, %v1371
        %1433 = vadd.xlane.f32.xlu0 %v1432
        %v1434 = vpop.xlane.xlu0 %1433
        %v1435 = vadd.f32 %v1373, %v1375
        %1436 = vadd.xlane.f32.xlu0 %v1435
        %v1437 = vpop.xlane.xlu0 %1436
        %v1438 = vadd.f32 %v1377, %v1379
        %1439 = vadd.xlane.f32.xlu0 %v1438
        %v1440 = vpop.xlane.xlu0 %1439
        %v1441 = vadd.f32 %v1381, %v1383
        %1442 = vadd.xlane.f32.xlu0 %v1441
        %v1443 = vpop.xlane.xlu0 %1442
        %v1444 = vadd.f32 %v1385, %v1387
        %1445 = vadd.xlane.f32.xlu0 %v1444
        %v1446 = vpop.xlane.xlu0 %1445
        %v1447 = vadd.f32 %v1389, %v1391
        %1448 = vadd.xlane.f32.xlu0 %v1447
        %v1449 = vpop.xlane.xlu0 %1448
        %v1450 = vadd.f32 %v1393, %v1395
        %1451 = vadd.xlane.f32.xlu0 %v1450
        %v1452 = vpop.xlane.xlu0 %1451
        %v1453 = vadd.f32 %v1397, %v1399
        %1454 = vadd.xlane.f32.xlu0 %v1453
        %v1455 = vpop.xlane.xlu0 %1454
        %v1456 = vadd.f32 %v1401, %v1403
        %1457 = vadd.xlane.f32.xlu0 %v1456
        %v1458 = vpop.xlane.xlu0 %1457
        %v1459 = vadd.f32 %v1405, %v1407
        %1460 = vadd.xlane.f32.xlu0 %v1459
        %v1461 = vpop.xlane.xlu0 %1460
        %v1462 = vadd.f32 %v1409, %v1411
        %1463 = vadd.xlane.f32.xlu0 %v1462
        %v1464 = vpop.xlane.xlu0 %1463
        %v1465 = vadd.f32 %v1413, %v1415
        %1466 = vadd.xlane.f32.xlu0 %v1465
        %v1467 = vpop.xlane.xlu0 %1466
        %v1468 = vadd.f32 %v1417, %v1419
        %1469 = vadd.xlane.f32.xlu0 %v1468
        %v1470 = vpop.xlane.xlu0 %1469
        %v1471 = vadd.f32 %v1421, %v1423
        %1472 = vadd.xlane.f32.xlu0 %v1471
        %v1473 = vpop.xlane.xlu0 %1472
        %v1474 = vadd.f32 %v1425, %v1427
        %1475 = vadd.xlane.f32.xlu0 %v1474
        %v1476 = vpop.xlane.xlu0 %1475
        %v1477 = vadd.f32 %v1429, %v1431
        %1478 = vadd.xlane.f32.xlu0 %v1477
        %v1479 = vpop.xlane.xlu0 %1478
        %v1480 = vrcp.pop %v1434
        %v1481 = vmul.f32 %v1369, %v1480
        %v1482 = vmul.f32 %v1371, %v1480
        %v1483 = vrcp.pop %v1437
        %v1484 = vmul.f32 %v1373, %v1483
        %v1485 = vmul.f32 %v1375, %v1483
        %v1486 = vrcp.pop %v1440
        %v1487 = vmul.f32 %v1377, %v1486
        %v1488 = vmul.f32 %v1379, %v1486
        %v1489 = vrcp.pop %v1443
        %v1490 = vmul.f32 %v1381, %v1489
        %v1491 = vmul.f32 %v1383, %v1489
        %v1492 = vrcp.pop %v1446
        %v1493 = vmul.f32 %v1385, %v1492
        %v1494 = vmul.f32 %v1387, %v1492
        %v1495 = vrcp.pop %v1449
        %v1496 = vmul.f32 %v1389, %v1495
        %v1497 = vmul.f32 %v1391, %v1495
        %v1498 = vrcp.pop %v1452
        %v1499 = vmul.f32 %v1393, %v1498
        %v1500 = vmul.f32 %v1395, %v1498
        %v1501 = vrcp.pop %v1455
        %v1502 = vmul.f32 %v1397, %v1501
        %v1503 = vmul.f32 %v1399, %v1501
        %v1504 = vrcp.pop %v1458
        %v1505 = vmul.f32 %v1401, %v1504
        %v1506 = vmul.f32 %v1403, %v1504
        %v1507 = vrcp.pop %v1461
        %v1508 = vmul.f32 %v1405, %v1507
        %v1509 = vmul.f32 %v1407, %v1507
        %v1510 = vrcp.pop %v1464
        %v1511 = vmul.f32 %v1409, %v1510
        %v1512 = vmul.f32 %v1411, %v1510
        %v1513 = vrcp.pop %v1467
        %v1514 = vmul.f32 %v1413, %v1513
        %v1515 = vmul.f32 %v1415, %v1513
        %v1516 = vrcp.pop %v1470
        %v1517 = vmul.f32 %v1417, %v1516
        %v1518 = vmul.f32 %v1419, %v1516
        %v1519 = vrcp.pop %v1473
        %v1520 = vmul.f32 %v1421, %v1519
        %v1521 = vmul.f32 %v1423, %v1519
        %v1522 = vrcp.pop %v1476
        %v1523 = vmul.f32 %v1425, %v1522
        %v1524 = vmul.f32 %v1427, %v1522
        %v1525 = vrcp.pop %v1479
        %v1526 = vmul.f32 %v1429, %v1525
        %v1527 = vmul.f32 %v1431, %v1525
        %v1528 = vpack.c.bf16 %v1484, %v1481
        %v1529 = vpack.c.bf16 %v1485, %v1482
        %v1530 = vpack.c.bf16 %v1490, %v1487
        %v1531 = vpack.c.bf16 %v1491, %v1488
        %v1532 = vpack.c.bf16 %v1496, %v1493
        %v1533 = vpack.c.bf16 %v1497, %v1494
        %v1534 = vpack.c.bf16 %v1502, %v1499
        %v1535 = vpack.c.bf16 %v1503, %v1500
        %v1536 = vpack.c.bf16 %v1508, %v1505
        %v1537 = vpack.c.bf16 %v1509, %v1506
        %v1538 = vpack.c.bf16 %v1514, %v1511
        %v1539 = vpack.c.bf16 %v1515, %v1512
        %v1540 = vpack.c.bf16 %v1520, %v1517
        %v1541 = vpack.c.bf16 %v1521, %v1518
        %v1542 = vpack.c.bf16 %v1526, %v1523
        %v1543 = vpack.c.bf16 %v1527, %v1524
        %v1560 = vunpack.c.l.b16 %v1528
        %v1561 = vunpack.c.l.b16 %v1529
        %v1562 = vunpack.c.h.b16 %v1528
        %v1563 = vunpack.c.h.b16 %v1529
        %v1564 = vunpack.c.l.b16 %v1530
        %v1565 = vunpack.c.l.b16 %v1531
        %v1566 = vunpack.c.h.b16 %v1530
        %v1567 = vunpack.c.h.b16 %v1531
        %v1568 = vunpack.c.l.b16 %v1532
        %v1569 = vunpack.c.l.b16 %v1533
        %v1570 = vunpack.c.h.b16 %v1532
        %v1571 = vunpack.c.h.b16 %v1533
        %v1572 = vunpack.c.l.b16 %v1534
        %v1573 = vunpack.c.l.b16 %v1535
        %v1574 = vunpack.c.h.b16 %v1534
        %v1575 = vunpack.c.h.b16 %v1535
        %v1576 = vunpack.c.l.b16 %v1536
        %v1577 = vunpack.c.l.b16 %v1537
        %v1578 = vunpack.c.h.b16 %v1536
        %v1579 = vunpack.c.h.b16 %v1537
        %v1580 = vunpack.c.l.b16 %v1538
        %v1581 = vunpack.c.l.b16 %v1539
        %v1582 = vunpack.c.h.b16 %v1538
        %v1583 = vunpack.c.h.b16 %v1539
        %v1584 = vunpack.c.l.b16 %v1540
        %v1585 = vunpack.c.l.b16 %v1541
        %v1586 = vunpack.c.h.b16 %v1540
        %v1587 = vunpack.c.h.b16 %v1541
        %v1588 = vunpack.c.l.b16 %v1542
        %v1589 = vunpack.c.l.b16 %v1543
        %v1590 = vunpack.c.h.b16 %v1542
        %v1591 = vunpack.c.h.b16 %v1543
        %v1592 = vpack.c.b16 %v1561, %v1560
        %v1593 = vpack.c.b16 %v1563, %v1562
        %v1594 = vpack.c.b16 %v1565, %v1564
        %v1595 = vpack.c.b16 %v1567, %v1566
        %v1596 = vpack.c.b16 %v1569, %v1568
        %v1597 = vpack.c.b16 %v1571, %v1570
        %v1598 = vpack.c.b16 %v1573, %v1572
        %v1599 = vpack.c.b16 %v1575, %v1574
        %v1600 = vpack.c.b16 %v1577, %v1576
        %v1601 = vpack.c.b16 %v1579, %v1578
        %v1602 = vpack.c.b16 %v1581, %v1580
        %v1603 = vpack.c.b16 %v1583, %v1582
        %v1604 = vpack.c.b16 %v1585, %v1584
        %v1605 = vpack.c.b16 %v1587, %v1586
        %v1606 = vpack.c.b16 %v1589, %v1588
        %v1607 = vpack.c.b16 %v1591, %v1590
        %1624 = vst [vmem:[%s270] sm:$0xff] %v1592
        %1625 = vst [vmem:[%s270 + $0x8] sm:$0xff] %v1593
        %1626 = vst [vmem:[%s270 + $0x10] sm:$0xff] %v1594
        %1627 = vst [vmem:[%s270 + $0x18] sm:$0xff] %v1595
        %1628 = vst [vmem:[%s270 + $0x20] sm:$0xff] %v1596
        %1629 = vst [vmem:[%s270 + $0x28] sm:$0xff] %v1597
        %1630 = vst [vmem:[%s270 + $0x30] sm:$0xff] %v1598
        %1631 = vst [vmem:[%s270 + $0x38] sm:$0xff] %v1599
        %1632 = vst [vmem:[%s270 + $0x40] sm:$0xff] %v1600
        %1633 = vst [vmem:[%s270 + $0x48] sm:$0xff] %v1601
        %1634 = vst [vmem:[%s270 + $0x50] sm:$0xff] %v1602
        %1635 = vst [vmem:[%s270 + $0x58] sm:$0xff] %v1603
        %1636 = vst [vmem:[%s270 + $0x60] sm:$0xff] %v1604
        %1637 = vst [vmem:[%s270 + $0x68] sm:$0xff] %v1605
        %1638 = vst [vmem:[%s270 + $0x70] sm:$0xff] %v1606
        %1639 = vst [vmem:[%s270 + $0x78] sm:$0xff] %v1607
        %v1640 = vld [vmem:[#allocation3] sm:$0xff]
        %v1641 = vld [vmem:[#allocation3 + $0x8] sm:$0xff]
        %v1642 = vld [vmem:[#allocation3 + $0x10] sm:$0xff]
        %v1643 = vld [vmem:[#allocation3 + $0x18] sm:$0xff]
        %v1644 = vld [vmem:[#allocation3 + $0x20] sm:$0xff]
        %v1645 = vld [vmem:[#allocation3 + $0x28] sm:$0xff]
        %v1646 = vld [vmem:[#allocation3 + $0x30] sm:$0xff]
        %v1647 = vld [vmem:[#allocation3 + $0x38] sm:$0xff]
        %v1648 = vld [vmem:[#allocation3 + $0x40] sm:$0xff]
        %v1649 = vld [vmem:[#allocation3 + $0x48] sm:$0xff]
        %v1650 = vld [vmem:[#allocation3 + $0x50] sm:$0xff]
        %v1651 = vld [vmem:[#allocation3 + $0x58] sm:$0xff]
        %v1652 = vld [vmem:[#allocation3 + $0x60] sm:$0xff]
        %v1653 = vld [vmem:[#allocation3 + $0x68] sm:$0xff]
        %v1654 = vld [vmem:[#allocation3 + $0x70] sm:$0xff]
        %v1655 = vld [vmem:[#allocation3 + $0x78] sm:$0xff]
        %1656 = vmatprep.subr.bf16.mxu0 0
        %1657 = vmatpush1.bf16.msra.mxu0 %v1640
        %1658 = vmatprep.subr.bf16.mxu0 0
        %1659 = vmatpush1.bf16.msra.mxu0 %v1641
        %1660 = vmatprep.subr.bf16.mxu0 0
        %1661 = vmatpush1.bf16.msra.mxu0 %v1642
        %1662 = vmatprep.subr.bf16.mxu0 0
        %1663 = vmatpush1.bf16.msra.mxu0 %v1643
        %1664 = vmatprep.subr.bf16.mxu0 0
        %1665 = vmatpush1.bf16.msra.mxu0 %v1644
        %1666 = vmatprep.subr.bf16.mxu0 0
        %1667 = vmatpush1.bf16.msra.mxu0 %v1645
        %1668 = vmatprep.subr.bf16.mxu0 0
        %1669 = vmatpush1.bf16.msra.mxu0 %v1646
        %1670 = vmatprep.subr.bf16.mxu0 0
        %1671 = vmatpush1.bf16.msra.mxu0 %v1647
        %1672 = vmatprep.subr.bf16.mxu0 0
        %1673 = vmatpush1.bf16.msra.mxu0 %v1648
        %1674 = vmatprep.subr.bf16.mxu0 0
        %1675 = vmatpush1.bf16.msra.mxu0 %v1649
        %1676 = vmatprep.subr.bf16.mxu0 0
        %1677 = vmatpush1.bf16.msra.mxu0 %v1650
        %1678 = vmatprep.subr.bf16.mxu0 0
        %1679 = vmatpush1.bf16.msra.mxu0 %v1651
        %1680 = vmatprep.subr.bf16.mxu0 0
        %1681 = vmatpush1.bf16.msra.mxu0 %v1652
        %1682 = vmatprep.subr.bf16.mxu0 0
        %1683 = vmatpush1.bf16.msra.mxu0 %v1653
        %1684 = vmatprep.subr.bf16.mxu0 0
        %1685 = vmatpush1.bf16.msra.mxu0 %v1654
        %1686 = vmatprep.subr.bf16.mxu0 0
        %1687 = vmatpush1.bf16.msra.mxu0 %v1655
        %1688 = vmatprep.mubr.bf16.mxu0 %v1529
        %1689 = vmatmul.mubr.bf16.gmra.mrb[0].mxu0 %v1528
        %v1690 = vpop.f32.mrb[0].mxu0
        %v1691 = vadd.f32 0.0, %v1690
        %v1692 = vpop.f32.mrb[0].mxu0
        %v1693 = vpop.f32.mrb[0].mxu0
        %v1694 = vadd.f32 0.0, %v1693
        %v1695 = vpop.f32.mrb[0].mxu0
        %1696 = vmatprep.mubr.bf16.mxu0 %v1531
        %1697 = vmatmul.mubr.bf16.gmra.mrb[0].mxu0 %v1530
        %v1698 = vpop.f32.mrb[0].mxu0
        %v1699 = vadd.f32 0.0, %v1698
        %v1700 = vpop.f32.mrb[0].mxu0
        %v1701 = vpop.f32.mrb[0].mxu0
        %v1702 = vadd.f32 0.0, %v1701
        %v1703 = vpop.f32.mrb[0].mxu0
        %1704 = vmatprep.mubr.bf16.mxu0 %v1533
        %1705 = vmatmul.mubr.bf16.gmra.mrb[0].mxu0 %v1532
        %v1706 = vpop.f32.mrb[0].mxu0
        %v1707 = vadd.f32 0.0, %v1706
        %v1708 = vpop.f32.mrb[0].mxu0
        %v1709 = vpop.f32.mrb[0].mxu0
        %v1710 = vadd.f32 0.0, %v1709
        %v1711 = vpop.f32.mrb[0].mxu0
        %1712 = vmatprep.mubr.bf16.mxu0 %v1535
        %1713 = vmatmul.mubr.bf16.gmra.mrb[0].mxu0 %v1534
        %v1714 = vpop.f32.mrb[0].mxu0
        %v1715 = vadd.f32 0.0, %v1714
        %v1716 = vpop.f32.mrb[0].mxu0
        %v1717 = vpop.f32.mrb[0].mxu0
        %v1718 = vadd.f32 0.0, %v1717
        %v1719 = vpop.f32.mrb[0].mxu0
        %1720 = vmatprep.mubr.bf16.mxu0 %v1537
        %1721 = vmatmul.mubr.bf16.gmra.mrb[0].mxu0 %v1536
        %v1722 = vpop.f32.mrb[0].mxu0
        %v1723 = vadd.f32 0.0, %v1722
        %v1724 = vpop.f32.mrb[0].mxu0
        %v1725 = vpop.f32.mrb[0].mxu0
        %v1726 = vadd.f32 0.0, %v1725
        %v1727 = vpop.f32.mrb[0].mxu0
        %1728 = vmatprep.mubr.bf16.mxu0 %v1539
        %1729 = vmatmul.mubr.bf16.gmra.mrb[0].mxu0 %v1538
        %v1730 = vpop.f32.mrb[0].mxu0
        %v1731 = vadd.f32 0.0, %v1730
        %v1732 = vpop.f32.mrb[0].mxu0
        %v1733 = vpop.f32.mrb[0].mxu0
        %v1734 = vadd.f32 0.0, %v1733
        %v1735 = vpop.f32.mrb[0].mxu0
        %1736 = vmatprep.mubr.bf16.mxu0 %v1541
        %1737 = vmatmul.mubr.bf16.gmra.mrb[0].mxu0 %v1540
        %v1738 = vpop.f32.mrb[0].mxu0
        %v1739 = vadd.f32 0.0, %v1738
        %v1740 = vpop.f32.mrb[0].mxu0
        %v1741 = vpop.f32.mrb[0].mxu0
        %v1742 = vadd.f32 0.0, %v1741
        %v1743 = vpop.f32.mrb[0].mxu0
        %1744 = vmatprep.mubr.bf16.mxu0 %v1543
        %1745 = vmatmul.mubr.bf16.gmra.mrb[0].mxu0 %v1542
        %v1746 = vpop.f32.mrb[0].mxu0
        %v1747 = vadd.f32 0.0, %v1746
        %v1748 = vpop.f32.mrb[0].mxu0
        %v1749 = vpop.f32.mrb[0].mxu0
        %v1750 = vadd.f32 0.0, %v1749
        %v1751 = vpop.f32.mrb[0].mxu0
        %1752 = vdwg.mxu0
        %1753 = vst [vmem:[%s263] sm:$0xff] %v1691
        %1754 = vst [vmem:[%s263 + $0x8] sm:$0xff] %v1694
        %1755 = vst [vmem:[%s263 + $0x10] sm:$0xff] %v1699
        %1756 = vst [vmem:[%s263 + $0x18] sm:$0xff] %v1702
        %1757 = vst [vmem:[%s263 + $0x20] sm:$0xff] %v1707
        %1758 = vst [vmem:[%s263 + $0x28] sm:$0xff] %v1710
        %1759 = vst [vmem:[%s263 + $0x30] sm:$0xff] %v1715
        %1760 = vst [vmem:[%s263 + $0x38] sm:$0xff] %v1718
        %1761 = vst [vmem:[%s263 + $0x40] sm:$0xff] %v1723
        %1762 = vst [vmem:[%s263 + $0x48] sm:$0xff] %v1726
        %1763 = vst [vmem:[%s263 + $0x50] sm:$0xff] %v1731
        %1764 = vst [vmem:[%s263 + $0x58] sm:$0xff] %v1734
        %1765 = vst [vmem:[%s263 + $0x60] sm:$0xff] %v1739
        %1766 = vst [vmem:[%s263 + $0x68] sm:$0xff] %v1742
        %1767 = vst [vmem:[%s263 + $0x70] sm:$0xff] %v1747
        %1768 = vst [vmem:[%s263 + $0x78] sm:$0xff] %v1750
        %s1769 = sand.u32 %s141, 1
        %s1770 = scalar_lea.sflag [#allocation5], %s1769
        %s1771 = sand.u32 %s141, 1
        %s1772 = smul.addr %s1771, 128
        %s1773 = scalar_lea.vmem [#allocation4], %s1772
        %s1774 = sand.u32 %s169, 1
        %s1775 = scalar_lea.sflag [#allocation7], %s1774
        %s1776 = sand.u32 %s169, 1
        %s1777 = smul.addr %s1776, 128
        %s1778 = scalar_lea.vmem [#allocation6], %s1777
        // Predicated region
        $region41: #{tpu_custom_call.1} parent=35 // pred_check
          %p1779 = pneg %p151
        $region42: #{tpu_custom_call.1} parent=35 // pred_check_branch
          %1781 = sbr.rel (%p1779) target = $region44
        $region43: #{tpu_custom_call.1} parent=35 // pred_region
          %s1782 = smul.u32 16, %s28
          %s1784 = ssub.s32 2048, 2048
          %1785 = vsyncadd %s1770, %s1784
          %s1786 = smul.addr %s27, 32
          %s1787 = sadd.s32 %s1782, %s1786
          %s1788 = smul.addr %s1787, 128
          %s1789 = scalar_lea.hbm %s4, %s1788
          %s1790 = sshll.u32 %s1773, 4
          %s1791 = int_to_ptr.vmem [resolvable:$true] %s1790
          %1796 = dma.vmem_to_hbm [thread:$0]  %s1791, 2048, %s1789, %s1770, 128, 128, 8
        $region44: #{tpu_custom_call.1} parent=35 // pred_fallthru
          _
        // Predicated region
        $region45: #{tpu_custom_call.1} parent=35 // pred_check
          %p1797 = pneg %p179
        $region46: #{tpu_custom_call.1} parent=35 // pred_check_branch
          %1799 = sbr.rel (%p1797) target = $region48
        $region47: #{tpu_custom_call.1} parent=35 // pred_region
          %s1800 = smul.u32 16, %s28
          %s1802 = ssub.s32 2048, 2048
          %1803 = vsyncadd %s1775, %s1802
          %s1804 = smul.addr %s1800, 2
          %s1805 = smul.addr %s27, 64
          %s1806 = sadd.s32 %s1804, %s1805
          %s1807 = smul.addr %s1806, 64
          %s1808 = scalar_lea.hbm %s5, %s1807
          %s1809 = sshll.u32 %s1778, 4
          %s1810 = int_to_ptr.vmem [resolvable:$true] %s1809
          %1815 = dma.vmem_to_hbm [thread:$0]  %s1810, 2048, %s1808, %s1775, 128, 128, 8
        $region48: #{tpu_custom_call.1} parent=35 // pred_fallthru
          _
      $region36: #{tpu_custom_call.1} parent=5 // pred_fallthru
        _
      %p1816 = scmp.le.s32.totalorder 2, %s18
      // Predicated region
      $region49: #{tpu_custom_call.1} parent=5 // pred_check
        %p1817 = pneg %p1816
      $region50: #{tpu_custom_call.1} parent=5 // pred_check_branch
        %1819 = sbr.rel (%p1817) target = $region52
      $region51: #{tpu_custom_call.1} parent=5 // pred_region
        %s1820 = ssub.s32 %s18, 2
        // Predicated region
        $region53: #{tpu_custom_call.1} parent=51 // pred_check
          %p1821 = pneg %p157
        $region54: #{tpu_custom_call.1} parent=51 // pred_check_branch
          %1823 = sbr.rel (%p1821) target = $region56
        $region55: #{tpu_custom_call.1} parent=51 // pred_region
          %s1824 = sand.u32 %s142, 1
          %s1825 = scalar_lea.sflag [#allocation5], %s1824
          %s1826 = sand.u32 %s142, 1
          %s1827 = smul.addr %s1826, 128
          %s1828 = scalar_lea.vmem [#allocation4], %s1827
          %1829 = dma.done %s1825, 2048
        $region56: #{tpu_custom_call.1} parent=51 // pred_fallthru
          _
        // Predicated region
        $region57: #{tpu_custom_call.1} parent=51 // pred_check
          %p1830 = pneg %p185
        $region58: #{tpu_custom_call.1} parent=51 // pred_check_branch
          %1832 = sbr.rel (%p1830) target = $region60
        $region59: #{tpu_custom_call.1} parent=51 // pred_region
          %s1833 = sand.u32 %s170, 1
          %s1834 = scalar_lea.sflag [#allocation7], %s1833
          %s1835 = sand.u32 %s170, 1
          %s1836 = smul.addr %s1835, 128
          %s1837 = scalar_lea.vmem [#allocation6], %s1836
          %1838 = dma.done %s1834, 2048
        $region60: #{tpu_custom_call.1} parent=51 // pred_fallthru
          _
      $region52: #{tpu_custom_call.1} parent=5 // pred_fallthru
        _
    $region6: #{tpu_custom_call.1} parent=1 // loop_footer
      %s22 = sadd.s32 1, %s18
    $region7: #{tpu_custom_call.1} parent=1 // loop_footer_branch
      %17 = sbr.rel target = $region3
    $region8: #{tpu_custom_call.1} parent=1 // loop_exit
      _
    %1839 = vsyncpa [#allocation5], 1
    %s1840 = scalar_lea.sflag [#allocation5], 1
    %1841 = vsyncpa %s1840, 1
    %1842 = vsyncpa [#allocation7], 1
    %s1843 = scalar_lea.sflag [#allocation7], 1
    %1844 = vsyncpa %s1843, 1

</llo_original>
